<compile_context>
chip_gen: v5e
topology: v5e:2x2
jax: 0.10.0
libtpu: 0.0.40
codegen_flags: <defaults>
</compile_context>

<pallas_src>
import functools

import jax
import jax.numpy as jnp
from jax.experimental import pallas as pl
from jax.experimental.pallas import tpu as pltpu


def fused_kernel(x_ref, w1_ref, gb_ref, w2_ref, o_ref, *, eps, inv_count):
    # x_ref:  [P, C_in]          f32   (token-major slab, lane dim = 576)
    # w1_ref: [C_in, C_mid]      bf16  (torch conv1 weight, transposed)
    # gb_ref: [2, C_mid]         f32   (row 0 = gamma, row 1 = beta)
    # w2_ref: [C_mid, Cout_blk]  bf16  (torch conv2 weight, transposed, tiled)
    # o_ref:  [P, Cout_blk]      f32   (lane dim = 640 / 1280 -> unmasked vst)
    x = jnp.maximum(x_ref[...], 0.0)                        # ReLU, f32 on VPU
    xb = x.astype(jnp.bfloat16)

    # 1x1 conv #1 on the MXU: bf16 operands, f32 accumulation.
    y1 = jnp.dot(xb, w1_ref[...],
                 preferred_element_type=jnp.float32)        # [P, C_mid] f32

    # BatchNorm2d (training-mode batch stats), two-pass centered moments, f32.
    mean = jnp.sum(y1, axis=0, keepdims=True) * inv_count   # [1, C_mid]
    diff = y1 - mean
    var = jnp.sum(diff * diff, axis=0, keepdims=True) * inv_count
    gamma = gb_ref[0:1, :]
    beta = gb_ref[1:2, :]
    scale = gamma * jax.lax.rsqrt(var + eps)                # [1, C_mid]
    y1n = diff * scale + beta                               # single FMA pass

    # 1x1 conv #2 on the MXU: bf16 operands, f32 accumulation.
    o_ref[...] = jnp.dot(y1n.astype(jnp.bfloat16), w2_ref[...],
                         preferred_element_type=jnp.float32)


def _num_tensorcores():
    """Best-effort TensorCores-per-chip query (2 on v7x, else 1)."""
    try:
        dev = jax.devices()[0]
        kind = (getattr(dev, "device_kind", "") or "").lower()
        if "v7" in kind:
            return 2
        n = getattr(dev, "num_cores", None)
        if n:
            return int(n)
    except Exception:
        pass
    return 1


def relu_conv_bn_conv(x_nchw, w1, gamma, beta, w2, *, eps=1e-5, num_cores=None):
    """x_nchw: [N, 576, H, W] f32
       w1: [160, 576]   (torch Conv2d weight [out, in, 1, 1] squeezed)
       gamma/beta: [160]
       w2: [1280, 160]"""
    N, C_in, H, W = x_nchw.shape
    C_mid = w1.shape[0]
    C_out = w2.shape[0]
    P = N * H * W

    # Token-major slab [P, C_in] (NCHW -> NHWC flatten). ~113 KB of movement;
    # trivial next to the ~1 MB of kernel HBM traffic, and it makes every
    # kernel-facing block lane-dense.
    x_pc = jnp.transpose(x_nchw, (0, 2, 3, 1)).reshape(P, C_in)

    # Pre-transpose + pre-cast weights to bf16 (halves weight DMA bytes).
    w1t = jnp.transpose(w1).astype(jnp.bfloat16)            # [C_in, C_mid]
    w2t = jnp.transpose(w2).astype(jnp.bfloat16)            # [C_mid, C_out]
    gb = jnp.stack([gamma.astype(jnp.float32),
                    beta.astype(jnp.float32)], axis=0)      # [2, C_mid]

    # 1 C_out block on single-TC chips (v5e/v6e), 2 on v7x (one per TC).
    if num_cores is None:
        num_cores = _num_tensorcores()
    n_blk = 2 if (num_cores >= 2 and C_out % 2 == 0
                  and (C_out // 2) % 128 == 0) else 1
    cout_block = C_out // n_blk

    flops = 2 * (C_in * C_mid + C_mid * C_out) * P
    bytes_accessed = (P * C_in * 4 + C_in * C_mid * 2 + C_mid * C_out * 2
                      + 2 * C_mid * 4 + P * C_out * 4)

    kernel = functools.partial(fused_kernel, eps=eps, inv_count=1.0 / P)

    out_pc = pl.pallas_call(
        kernel,
        out_shape=jax.ShapeDtypeStruct((P, C_out), jnp.float32),
        grid=(n_blk,),
        in_specs=[
            pl.BlockSpec((P, C_in), lambda i: (0, 0)),           # x (resident)
            pl.BlockSpec((C_in, C_mid), lambda i: (0, 0)),       # w1 (resident)
            pl.BlockSpec((2, C_mid), lambda i: (0, 0)),          # gamma/beta
            pl.BlockSpec((C_mid, cout_block), lambda i: (0, i)),  # w2 tile
        ],
        out_specs=pl.BlockSpec((P, cout_block), lambda i: (0, i)),
        compiler_params=pltpu.CompilerParams(
            dimension_semantics=("parallel",)),
        cost_estimate=pl.CostEstimate(flops=flops,
                                      transcendentals=C_mid,
                                      bytes_accessed=bytes_accessed),
    )(x_pc, w1t, gb, w2t)

    # [P, C_out] -> [N, C_out, H, W]
    return out_pc.reshape(N, H, W, C_out).transpose(0, 3, 1, 2)


if __name__ == "__main__":
    key = jax.random.PRNGKey(0)
    k_x, k_w1, k_w2, k_g, k_b = jax.random.split(key, 5)

    N, C_in, H, W = 1, 576, 7, 7
    C_mid, C_out = 160, 1280

    # Deterministic synthetic parameters (shapes match the torch module;
    # conv weights stored in torch's [out, in] layout, kernel dims squeezed).
    x = jax.random.normal(k_x, (N, C_in, H, W), dtype=jnp.float32)
    w1 = jax.random.normal(k_w1, (C_mid, C_in), dtype=jnp.float32) * 0.05
    w2 = jax.random.normal(k_w2, (C_out, C_mid), dtype=jnp.float32) * 0.05
    gamma = 1.0 + 0.1 * jax.random.normal(k_g, (C_mid,), dtype=jnp.float32)
    beta = 0.1 * jax.random.normal(k_b, (C_mid,), dtype=jnp.float32)

    fn = jax.jit(relu_conv_bn_conv)
    out = fn(x, w1, gamma, beta, w2)
    out = jax.block_until_ready(out)
    assert out.shape == (N, C_out, H, W), out.shape

    # Pure-JAX reference with the same bf16-operand / f32-accumulate matmul
    # precision (token-major layout, same BN math).
    x2d = jnp.transpose(x, (0, 2, 3, 1)).reshape(-1, C_in)
    xr = jnp.maximum(x2d, 0.0).astype(jnp.bfloat16)
    y1 = jnp.dot(xr, w1.astype(jnp.bfloat16).T,
                 preferred_element_type=jnp.float32)
    mu = y1.mean(axis=0, keepdims=True)
    var = ((y1 - mu) ** 2).mean(axis=0, keepdims=True)
    y1n = (y1 - mu) / jnp.sqrt(var + 1e-5) * gamma[None, :] + beta[None, :]
    ref2d = jnp.dot(y1n.astype(jnp.bfloat16), w2.astype(jnp.bfloat16).T,
                    preferred_element_type=jnp.float32)
    ref = ref2d.reshape(N, H, W, C_out).transpose(0, 3, 1, 2)

    assert jnp.allclose(out, ref, atol=2e-2, rtol=2e-2), \
        float(jnp.max(jnp.abs(out - ref)))

    print("KERNEL_OK")
</pallas_src>

<mosaic_0001>
module attributes {stable_mosaic.version = 11 : i64} {
  func.func @fused_kernel(%arg0: i32, %arg1: memref<49x576xf32, #tpu.memory_space<vmem>>, %arg2: memref<576x160xbf16, #tpu.memory_space<vmem>>, %arg3: memref<2x160xf32, #tpu.memory_space<vmem>>, %arg4: memref<160x1280xbf16, #tpu.memory_space<vmem>>, %arg5: memref<49x1280xf32, #tpu.memory_space<vmem>>) attributes {dimension_semantics = [#tpu.dimension_semantics<parallel>], iteration_bounds = array<i64: 1>, scalar_prefetch = 0 : i64, scratch_operands = 0 : i64, tpu.core_type = #tpu.core_type<tc>, window_params = [{pipeline_mode = #tpu.pipeline_mode<synchronous>, transform_indices = @transform_0, window_bounds = array<i64: 49, 576>}, {pipeline_mode = #tpu.pipeline_mode<synchronous>, transform_indices = @transform_1, window_bounds = array<i64: 576, 160>}, {pipeline_mode = #tpu.pipeline_mode<synchronous>, transform_indices = @transform_2, window_bounds = array<i64: 2, 160>}, {transform_indices = @transform_3, window_bounds = array<i64: 160, 1280>}, {transform_indices = @transform_4, window_bounds = array<i64: 49, 1280>}]} {
    %c0 = arith.constant 0 : index
    %c0_0 = arith.constant 0 : index
    %0 = vector.load %arg1[%c0, %c0_0] : memref<49x576xf32, #tpu.memory_space<vmem>>, vector<49x576xf32>
    %cst = arith.constant 0.000000e+00 : f32
    %1 = vector.broadcast %cst : f32 to vector<49x576xf32>
    %2 = arith.maximumf %0, %1 : vector<49x576xf32>
    %3 = arith.truncf %2 : vector<49x576xf32> to vector<49x576xbf16>
    %c0_1 = arith.constant 0 : index
    %c0_2 = arith.constant 0 : index
    %4 = vector.load %arg2[%c0_1, %c0_2] : memref<576x160xbf16, #tpu.memory_space<vmem>>, vector<576x160xbf16>
    %cst_3 = arith.constant dense<0.000000e+00> : vector<49x160xf32>
    %5 = tpu.matmul %3, %4, %cst_3 {dimension_numbers = #tpu.dot_dimension_numbers<[1], [0], [0], [1], [0, 0, 1, 1], [], []>} : vector<49x576xbf16>, vector<576x160xbf16>, vector<49x160xf32> -> vector<49x160xf32>
    %cst_4 = arith.constant dense<0.000000e+00> : vector<160xf32>
    %6 = vector.multi_reduction <add>, %5, %cst_4 [0] : vector<49x160xf32> to vector<160xf32>
    %7 = vector.shape_cast %6 : vector<160xf32> to vector<1x160xf32>
    %cst_5 = arith.constant 0.0204081628 : f32
    %8 = vector.broadcast %cst_5 : f32 to vector<1x160xf32>
    %9 = arith.mulf %7, %8 : vector<1x160xf32>
    %10 = vector.broadcast %9 : vector<1x160xf32> to vector<49x160xf32>
    %11 = arith.subf %5, %10 : vector<49x160xf32>
    %12 = arith.mulf %11, %11 : vector<49x160xf32>
    %cst_6 = arith.constant dense<0.000000e+00> : vector<160xf32>
    %13 = vector.multi_reduction <add>, %12, %cst_6 [0] : vector<49x160xf32> to vector<160xf32>
    %14 = vector.shape_cast %13 : vector<160xf32> to vector<1x160xf32>
    %cst_7 = arith.constant 0.0204081628 : f32
    %15 = vector.broadcast %cst_7 : f32 to vector<1x160xf32>
    %16 = arith.mulf %14, %15 : vector<1x160xf32>
    %c0_8 = arith.constant 0 : index
    %c0_9 = arith.constant 0 : index
    %17 = vector.load %arg3[%c0_8, %c0_9] : memref<2x160xf32, #tpu.memory_space<vmem>>, vector<1x160xf32>
    %c1 = arith.constant 1 : index
    %c0_10 = arith.constant 0 : index
    %18 = vector.load %arg3[%c1, %c0_10] : memref<2x160xf32, #tpu.memory_space<vmem>>, vector<1x160xf32>
    %cst_11 = arith.constant 9.99999974E-6 : f32
    %19 = vector.broadcast %cst_11 : f32 to vector<1x160xf32>
    %20 = arith.addf %16, %19 : vector<1x160xf32>
    %21 = math.rsqrt %20 : vector<1x160xf32>
    %22 = arith.mulf %17, %21 : vector<1x160xf32>
    %23 = vector.broadcast %22 : vector<1x160xf32> to vector<49x160xf32>
    %24 = arith.mulf %11, %23 : vector<49x160xf32>
    %25 = vector.broadcast %18 : vector<1x160xf32> to vector<49x160xf32>
    %26 = arith.addf %24, %25 : vector<49x160xf32>
    %27 = arith.truncf %26 : vector<49x160xf32> to vector<49x160xbf16>
    %c0_12 = arith.constant 0 : index
    %c0_13 = arith.constant 0 : index
    %28 = vector.load %arg4[%c0_12, %c0_13] : memref<160x1280xbf16, #tpu.memory_space<vmem>>, vector<160x1280xbf16>
    %cst_14 = arith.constant dense<0.000000e+00> : vector<49x1280xf32>
    %29 = tpu.matmul %27, %28, %cst_14 {dimension_numbers = #tpu.dot_dimension_numbers<[1], [0], [0], [1], [0, 0, 1, 1], [], []>} : vector<49x160xbf16>, vector<160x1280xbf16>, vector<49x1280xf32> -> vector<49x1280xf32>
    %c0_15 = arith.constant 0 : index
    %c0_16 = arith.constant 0 : index
    %30 = vector.load %arg5[%c0_15, %c0_16] : memref<49x1280xf32, #tpu.memory_space<vmem>>, vector<49x1280xf32>
    tpu.vector_store %arg5[%c0_15, %c0_16], %29 {strides = array<i32>} : memref<49x1280xf32, #tpu.memory_space<vmem>>, vector<49x1280xf32>,
    return
  }
  func.func @transform_0(%arg0: i32) -> (i32, i32) {
    %c0_i32 = arith.constant 0 : i32
    %c0_i32_0 = arith.constant 0 : i32
    %c0_i32_1 = arith.constant 0 : i32
    return %c0_i32, %c0_i32_0 : i32, i32
  }
  func.func @transform_1(%arg0: i32) -> (i32, i32) {
    %c0_i32 = arith.constant 0 : i32
    %c0_i32_0 = arith.constant 0 : i32
    %c0_i32_1 = arith.constant 0 : i32
    return %c0_i32, %c0_i32_0 : i32, i32
  }
  func.func @transform_2(%arg0: i32) -> (i32, i32) {
    %c0_i32 = arith.constant 0 : i32
    %c0_i32_0 = arith.constant 0 : i32
    %c0_i32_1 = arith.constant 0 : i32
    return %c0_i32, %c0_i32_0 : i32, i32
  }
  func.func @transform_3(%arg0: i32) -> (i32, i32) {
    %c0_i32 = arith.constant 0 : i32
    %c0_i32_0 = arith.constant 0 : i32
    return %c0_i32, %arg0 : i32, i32
  }
  func.func @transform_4(%arg0: i32) -> (i32, i32) {
    %c0_i32 = arith.constant 0 : i32
    %c0_i32_0 = arith.constant 0 : i32
    return %c0_i32, %arg0 : i32, i32
  }
}

</mosaic_0001>

<llo_original>
// kernel: relu_conv_bn_conv.1
$region0: #{relu_conv_bn_conv.1}
  #allocation0 [shape = 'u32[]', space=smem, size = 0x4, offset = 0x4, fixed_abs, tag = 'smem constant byte address 0x4 - core index']
  #allocation1 [shape = 'u32[72,128]{1,0:T(1,128)}', space=vmem, size = 0x9000, scoped, tag = 'internal scratch']
  %s0 = inlined_call_operand.vmem [shape: f32[49,576], index: 0, kind: input, shape index: {}]
  %s1 = inlined_call_operand.vmem [shape: bf16[576,160], index: 1, kind: input, shape index: {}]
  %s2 = inlined_call_operand.vmem [shape: f32[2,160], index: 2, kind: input, shape index: {}]
  %s3 = inlined_call_operand.vmem [shape: bf16[160,1280], index: 3, kind: input, shape index: {}]
  %s4 = inlined_call_operand.vmem [shape: f32[49,1280], index: 4, kind: output, shape index: {}]
  %s5 = sld [smem:[#allocation0]]
  $region26: #{relu_conv_bn_conv.1} parent=0
    _
  %s7 = ssub.s32 1, %s5
  %s8 = scalar_select 0, %s7, %s5
  // Predicated region
  $region2: #{relu_conv_bn_conv.1} parent=0 // pred_check
    _
  $region3: #{relu_conv_bn_conv.1} parent=0 // pred_check_branch
    %10 = sbr.rel (0) target = $region5
  $region4: #{relu_conv_bn_conv.1} parent=0 // pred_region
    _
  $region5: #{relu_conv_bn_conv.1} parent=0 // pred_fallthru
    _
  // Predicated region
  $region6: #{relu_conv_bn_conv.1} parent=0 // pred_check
    _
  $region7: #{relu_conv_bn_conv.1} parent=0 // pred_check_branch
    %12 = sbr.rel (0) target = $region9
  $region8: #{relu_conv_bn_conv.1} parent=0 // pred_region
    _
  $region9: #{relu_conv_bn_conv.1} parent=0 // pred_fallthru
    _
  // Predicated region
  $region10: #{relu_conv_bn_conv.1} parent=0 // pred_check
    _
  $region11: #{relu_conv_bn_conv.1} parent=0 // pred_check_branch
    %14 = sbr.rel (0) target = $region13
  $region12: #{relu_conv_bn_conv.1} parent=0 // pred_region
    _
  $region13: #{relu_conv_bn_conv.1} parent=0 // pred_fallthru
    _
  // Predicated region
  $region14: #{relu_conv_bn_conv.1} parent=0 // pred_check
    _
  $region15: #{relu_conv_bn_conv.1} parent=0 // pred_check_branch
    %16 = sbr.rel (0) target = $region17
  $region16: #{relu_conv_bn_conv.1} parent=0 // pred_region
    _
  $region17: #{relu_conv_bn_conv.1} parent=0 // pred_fallthru
    _
  %v18 = vld [vmem:[%s0] sm:$0xff]
  %v19 = vld [vmem:[%s0 + $0x8] sm:$0xff]
  %v20 = vld [vmem:[%s0 + $0x10] sm:$0xff]
  %v21 = vld [vmem:[%s0 + $0x18] sm:$0xff]
  %v22 = vld [vmem:[%s0 + $0x20] sm:$0xff]
  %v23 = vld [vmem:[%s0 + $0x28] sm:$0xff]
  %v24 = vld [vmem:[%s0 + $0x30] sm:$0xff]
  %v25 = vld [vmem:[%s0 + $0x38] sm:$0xff]
  %v26 = vld [vmem:[%s0 + $0x40] sm:$0xff]
  %v27 = vld [vmem:[%s0 + $0x48] sm:$0xff]
  %v28 = vld [vmem:[%s0 + $0x50] sm:$0xff]
  %v29 = vld [vmem:[%s0 + $0x58] sm:$0xff]
  %v30 = vld [vmem:[%s0 + $0x60] sm:$0xff]
  %v31 = vld [vmem:[%s0 + $0x68] sm:$0xff]
  %v32 = vld [vmem:[%s0 + $0x70] sm:$0xff]
  %v33 = vld [vmem:[%s0 + $0x78] sm:$0xff]
  %v34 = vld [vmem:[%s0 + $0x80] sm:$0xff]
  %v35 = vld [vmem:[%s0 + $0x88] sm:$0xff]
  %v36 = vld [vmem:[%s0 + $0x90] sm:$0xff]
  %v37 = vld [vmem:[%s0 + $0x98] sm:$0xff]
  %v38 = vld [vmem:[%s0 + $0xa0] sm:$0xff]
  %v39 = vld [vmem:[%s0 + $0xa8] sm:$0xff]
  %v40 = vld [vmem:[%s0 + $0xb0] sm:$0xff]
  %v41 = vld [vmem:[%s0 + $0xb8] sm:$0xff]
  %v42 = vld [vmem:[%s0 + $0xc0] sm:$0xff]
  %v43 = vld [vmem:[%s0 + $0xc8] sm:$0xff]
  %v44 = vld [vmem:[%s0 + $0xd0] sm:$0xff]
  %v45 = vld [vmem:[%s0 + $0xd8] sm:$0xff]
  %v46 = vld [vmem:[%s0 + $0xe0] sm:$0xff]
  %v47 = vld [vmem:[%s0 + $0xe8] sm:$0xff]
  %v48 = vld [vmem:[%s0 + $0xf0] sm:$0x1]
  %v49 = vld [vmem:[%s0 + $0xf8] sm:$0x1]
  %v50 = vld [vmem:[%s0 + $0x100] sm:$0x1]
  %v51 = vld [vmem:[%s0 + $0x108] sm:$0x1]
  %v52 = vld [vmem:[%s0 + $0x110] sm:$0x1]
  %v53 = vmax.f32 %v18, 0.0
  %v54 = vmax.f32 %v19, 0.0
  %v55 = vmax.f32 %v20, 0.0
  %v56 = vmax.f32 %v21, 0.0
  %v57 = vmax.f32 %v22, 0.0
  %v58 = vmax.f32 %v23, 0.0
  %v59 = vmax.f32 %v24, 0.0
  %v60 = vmax.f32 %v25, 0.0
  %v61 = vmax.f32 %v26, 0.0
  %v62 = vmax.f32 %v27, 0.0
  %v63 = vmax.f32 %v28, 0.0
  %v64 = vmax.f32 %v29, 0.0
  %v65 = vmax.f32 %v30, 0.0
  %v66 = vmax.f32 %v31, 0.0
  %v67 = vmax.f32 %v32, 0.0
  %v68 = vmax.f32 %v33, 0.0
  %v69 = vmax.f32 %v34, 0.0
  %v70 = vmax.f32 %v35, 0.0
  %v71 = vmax.f32 %v36, 0.0
  %v72 = vmax.f32 %v37, 0.0
  %v73 = vmax.f32 %v38, 0.0
  %v74 = vmax.f32 %v39, 0.0
  %v75 = vmax.f32 %v40, 0.0
  %v76 = vmax.f32 %v41, 0.0
  %v77 = vmax.f32 %v42, 0.0
  %v78 = vmax.f32 %v43, 0.0
  %v79 = vmax.f32 %v44, 0.0
  %v80 = vmax.f32 %v45, 0.0
  %v81 = vmax.f32 %v46, 0.0
  %v82 = vmax.f32 %v47, 0.0
  %v83 = vmax.f32 %v48, 0.0
  %v84 = vmax.f32 %v49, 0.0
  %v85 = vmax.f32 %v50, 0.0
  %v86 = vmax.f32 %v51, 0.0
  %v87 = vmax.f32 %v52, 0.0
  %v88 = vpack.c.bf16 %v58, %v53
  %v89 = vpack.c.bf16 %v59, %v54
  %v90 = vpack.c.bf16 %v60, %v55
  %v91 = vpack.c.bf16 %v61, %v56
  %v92 = vpack.c.bf16 %v62, %v57
  %v93 = vpack.c.bf16 %v68, %v63
  %v94 = vpack.c.bf16 %v69, %v64
  %v95 = vpack.c.bf16 %v70, %v65
  %v96 = vpack.c.bf16 %v71, %v66
  %v97 = vpack.c.bf16 %v72, %v67
  %v98 = vpack.c.bf16 %v78, %v73
  %v99 = vpack.c.bf16 %v79, %v74
  %v100 = vpack.c.bf16 %v80, %v75
  %v101 = vpack.c.bf16 %v81, %v76
  %v102 = vpack.c.bf16 %v82, %v77
  %v103 = vpack.c.bf16 %v83, %v83
  %v104 = vpack.c.bf16 %v84, %v84
  %v105 = vpack.c.bf16 %v85, %v85
  %v106 = vpack.c.bf16 %v86, %v86
  %v107 = vpack.c.bf16 %v87, %v87
  %v108 = vld [vmem:[%s1] sm:$0xff]
  %v109 = vld [vmem:[%s1 + $0x8] sm:$0xff]
  %v110 = vld [vmem:[%s1 + $0x10] sm:$0xff]
  %v111 = vld [vmem:[%s1 + $0x18] sm:$0xff]
  %v112 = vld [vmem:[%s1 + $0x20] sm:$0xff]
  %v113 = vld [vmem:[%s1 + $0x28] sm:$0xff]
  %v114 = vld [vmem:[%s1 + $0x30] sm:$0xff]
  %v115 = vld [vmem:[%s1 + $0x38] sm:$0xff]
  %v116 = vld [vmem:[%s1 + $0x40] sm:$0xff]
  %v117 = vld [vmem:[%s1 + $0x48] sm:$0xff]
  %v118 = vld [vmem:[%s1 + $0x50] sm:$0xff]
  %v119 = vld [vmem:[%s1 + $0x58] sm:$0xff]
  %v120 = vld [vmem:[%s1 + $0x60] sm:$0xff]
  %v121 = vld [vmem:[%s1 + $0x68] sm:$0xff]
  %v122 = vld [vmem:[%s1 + $0x70] sm:$0xff]
  %v123 = vld [vmem:[%s1 + $0x78] sm:$0xff]
  %v124 = vld [vmem:[%s1 + $0x80] sm:$0xff]
  %v125 = vld [vmem:[%s1 + $0x88] sm:$0xff]
  %v126 = vld [vmem:[%s1 + $0x90] sm:$0xff]
  %v127 = vld [vmem:[%s1 + $0x98] sm:$0xff]
  %v128 = vld [vmem:[%s1 + $0xa0] sm:$0xff]
  %v129 = vld [vmem:[%s1 + $0xa8] sm:$0xff]
  %v130 = vld [vmem:[%s1 + $0xb0] sm:$0xff]
  %v131 = vld [vmem:[%s1 + $0xb8] sm:$0xff]
  %v132 = vld [vmem:[%s1 + $0xc0] sm:$0xff]
  %v133 = vld [vmem:[%s1 + $0xc8] sm:$0xff]
  %v134 = vld [vmem:[%s1 + $0xd0] sm:$0xff]
  %v135 = vld [vmem:[%s1 + $0xd8] sm:$0xff]
  %v136 = vld [vmem:[%s1 + $0xe0] sm:$0xff]
  %v137 = vld [vmem:[%s1 + $0xe8] sm:$0xff]
  %v138 = vld [vmem:[%s1 + $0xf0] sm:$0xff]
  %v139 = vld [vmem:[%s1 + $0xf8] sm:$0xff]
  %v140 = vld [vmem:[%s1 + $0x100] sm:$0xff]
  %v141 = vld [vmem:[%s1 + $0x108] sm:$0xff]
  %v142 = vld [vmem:[%s1 + $0x110] sm:$0xff]
  %v143 = vld [vmem:[%s1 + $0x118] sm:$0xff]
  %v144 = vld [vmem:[%s1 + $0x120] sm:$0xff]
  %v145 = vld [vmem:[%s1 + $0x128] sm:$0xff]
  %v146 = vld [vmem:[%s1 + $0x130] sm:$0xff]
  %v147 = vld [vmem:[%s1 + $0x138] sm:$0xff]
  %v148 = vld [vmem:[%s1 + $0x140] sm:$0xff]
  %v149 = vld [vmem:[%s1 + $0x148] sm:$0xff]
  %v150 = vld [vmem:[%s1 + $0x150] sm:$0xff]
  %v151 = vld [vmem:[%s1 + $0x158] sm:$0xff]
  %v152 = vld [vmem:[%s1 + $0x160] sm:$0xff]
  %v153 = vld [vmem:[%s1 + $0x168] sm:$0xff]
  %v154 = vld [vmem:[%s1 + $0x170] sm:$0xff]
  %v155 = vld [vmem:[%s1 + $0x178] sm:$0xff]
  %v156 = vld [vmem:[%s1 + $0x180] sm:$0xff]
  %v157 = vld [vmem:[%s1 + $0x188] sm:$0xff]
  %v158 = vld [vmem:[%s1 + $0x190] sm:$0xff]
  %v159 = vld [vmem:[%s1 + $0x198] sm:$0xff]
  %v160 = vld [vmem:[%s1 + $0x1a0] sm:$0xff]
  %v161 = vld [vmem:[%s1 + $0x1a8] sm:$0xff]
  %v162 = vld [vmem:[%s1 + $0x1b0] sm:$0xff]
  %v163 = vld [vmem:[%s1 + $0x1b8] sm:$0xff]
  %v164 = vld [vmem:[%s1 + $0x1c0] sm:$0xff]
  %v165 = vld [vmem:[%s1 + $0x1c8] sm:$0xff]
  %v166 = vld [vmem:[%s1 + $0x1d0] sm:$0xff]
  %v167 = vld [vmem:[%s1 + $0x1d8] sm:$0xff]
  %v168 = vld [vmem:[%s1 + $0x1e0] sm:$0xff]
  %v169 = vld [vmem:[%s1 + $0x1e8] sm:$0xff]
  %v170 = vld [vmem:[%s1 + $0x1f0] sm:$0xff]
  %v171 = vld [vmem:[%s1 + $0x1f8] sm:$0xff]
  %v172 = vld [vmem:[%s1 + $0x200] sm:$0xff]
  %v173 = vld [vmem:[%s1 + $0x208] sm:$0xff]
  %v174 = vld [vmem:[%s1 + $0x210] sm:$0xff]
  %v175 = vld [vmem:[%s1 + $0x218] sm:$0xff]
  %v176 = vld [vmem:[%s1 + $0x220] sm:$0xff]
  %v177 = vld [vmem:[%s1 + $0x228] sm:$0xff]
  %v178 = vld [vmem:[%s1 + $0x230] sm:$0xff]
  %v179 = vld [vmem:[%s1 + $0x238] sm:$0xff]
  %v252 = vunpack.c.l.b16 %v108
  %v253 = vunpack.c.h.b16 %v108
  %v254 = vunpack.c.l.b16 %v109
  %v255 = vunpack.c.h.b16 %v109
  %v256 = vunpack.c.l.b16 %v110
  %v257 = vunpack.c.h.b16 %v110
  %v258 = vunpack.c.l.b16 %v111
  %v259 = vunpack.c.h.b16 %v111
  %v260 = vunpack.c.l.b16 %v112
  %v261 = vunpack.c.h.b16 %v112
  %v262 = vunpack.c.l.b16 %v113
  %v263 = vunpack.c.h.b16 %v113
  %v264 = vunpack.c.l.b16 %v114
  %v265 = vunpack.c.h.b16 %v114
  %v266 = vunpack.c.l.b16 %v115
  %v267 = vunpack.c.h.b16 %v115
  %v268 = vunpack.c.l.b16 %v116
  %v269 = vunpack.c.h.b16 %v116
  %v270 = vunpack.c.l.b16 %v117
  %v271 = vunpack.c.h.b16 %v117
  %v272 = vunpack.c.l.b16 %v118
  %v273 = vunpack.c.h.b16 %v118
  %v274 = vunpack.c.l.b16 %v119
  %v275 = vunpack.c.h.b16 %v119
  %v276 = vunpack.c.l.b16 %v120
  %v277 = vunpack.c.h.b16 %v120
  %v278 = vunpack.c.l.b16 %v121
  %v279 = vunpack.c.h.b16 %v121
  %v280 = vunpack.c.l.b16 %v122
  %v281 = vunpack.c.h.b16 %v122
  %v282 = vunpack.c.l.b16 %v123
  %v283 = vunpack.c.h.b16 %v123
  %v284 = vunpack.c.l.b16 %v124
  %v285 = vunpack.c.h.b16 %v124
  %v286 = vunpack.c.l.b16 %v125
  %v287 = vunpack.c.h.b16 %v125
  %v288 = vunpack.c.l.b16 %v126
  %v289 = vunpack.c.h.b16 %v126
  %v290 = vunpack.c.l.b16 %v127
  %v291 = vunpack.c.h.b16 %v127
  %v292 = vunpack.c.l.b16 %v128
  %v293 = vunpack.c.h.b16 %v128
  %v294 = vunpack.c.l.b16 %v129
  %v295 = vunpack.c.h.b16 %v129
  %v296 = vunpack.c.l.b16 %v130
  %v297 = vunpack.c.h.b16 %v130
  %v298 = vunpack.c.l.b16 %v131
  %v299 = vunpack.c.h.b16 %v131
  %v300 = vunpack.c.l.b16 %v132
  %v301 = vunpack.c.h.b16 %v132
  %v302 = vunpack.c.l.b16 %v133
  %v303 = vunpack.c.h.b16 %v133
  %v304 = vunpack.c.l.b16 %v134
  %v305 = vunpack.c.h.b16 %v134
  %v306 = vunpack.c.l.b16 %v135
  %v307 = vunpack.c.h.b16 %v135
  %v308 = vunpack.c.l.b16 %v136
  %v309 = vunpack.c.h.b16 %v136
  %v310 = vunpack.c.l.b16 %v137
  %v311 = vunpack.c.h.b16 %v137
  %v312 = vunpack.c.l.b16 %v138
  %v313 = vunpack.c.h.b16 %v138
  %v314 = vunpack.c.l.b16 %v139
  %v315 = vunpack.c.h.b16 %v139
  %v316 = vunpack.c.l.b16 %v140
  %v317 = vunpack.c.h.b16 %v140
  %v318 = vunpack.c.l.b16 %v141
  %v319 = vunpack.c.h.b16 %v141
  %v320 = vunpack.c.l.b16 %v142
  %v321 = vunpack.c.h.b16 %v142
  %v322 = vunpack.c.l.b16 %v143
  %v323 = vunpack.c.h.b16 %v143
  %v324 = vunpack.c.l.b16 %v144
  %v325 = vunpack.c.h.b16 %v144
  %v326 = vunpack.c.l.b16 %v145
  %v327 = vunpack.c.h.b16 %v145
  %v328 = vunpack.c.l.b16 %v146
  %v329 = vunpack.c.h.b16 %v146
  %v330 = vunpack.c.l.b16 %v147
  %v331 = vunpack.c.h.b16 %v147
  %v332 = vunpack.c.l.b16 %v148
  %v333 = vunpack.c.h.b16 %v148
  %v334 = vunpack.c.l.b16 %v149
  %v335 = vunpack.c.h.b16 %v149
  %v336 = vunpack.c.l.b16 %v150
  %v337 = vunpack.c.h.b16 %v150
  %v338 = vunpack.c.l.b16 %v151
  %v339 = vunpack.c.h.b16 %v151
  %v340 = vunpack.c.l.b16 %v152
  %v341 = vunpack.c.h.b16 %v152
  %v342 = vunpack.c.l.b16 %v153
  %v343 = vunpack.c.h.b16 %v153
  %v344 = vunpack.c.l.b16 %v154
  %v345 = vunpack.c.h.b16 %v154
  %v346 = vunpack.c.l.b16 %v155
  %v347 = vunpack.c.h.b16 %v155
  %v348 = vunpack.c.l.b16 %v156
  %v349 = vunpack.c.h.b16 %v156
  %v350 = vunpack.c.l.b16 %v157
  %v351 = vunpack.c.h.b16 %v157
  %v352 = vunpack.c.l.b16 %v158
  %v353 = vunpack.c.h.b16 %v158
  %v354 = vunpack.c.l.b16 %v159
  %v355 = vunpack.c.h.b16 %v159
  %v356 = vunpack.c.l.b16 %v160
  %v357 = vunpack.c.h.b16 %v160
  %v358 = vunpack.c.l.b16 %v161
  %v359 = vunpack.c.h.b16 %v161
  %v360 = vunpack.c.l.b16 %v162
  %v361 = vunpack.c.h.b16 %v162
  %v362 = vunpack.c.l.b16 %v163
  %v363 = vunpack.c.h.b16 %v163
  %v364 = vunpack.c.l.b16 %v164
  %v365 = vunpack.c.h.b16 %v164
  %v366 = vunpack.c.l.b16 %v165
  %v367 = vunpack.c.h.b16 %v165
  %v368 = vunpack.c.l.b16 %v166
  %v369 = vunpack.c.h.b16 %v166
  %v370 = vunpack.c.l.b16 %v167
  %v371 = vunpack.c.h.b16 %v167
  %v372 = vunpack.c.l.b16 %v168
  %v373 = vunpack.c.h.b16 %v168
  %v374 = vunpack.c.l.b16 %v169
  %v375 = vunpack.c.h.b16 %v169
  %v376 = vunpack.c.l.b16 %v170
  %v377 = vunpack.c.h.b16 %v170
  %v378 = vunpack.c.l.b16 %v171
  %v379 = vunpack.c.h.b16 %v171
  %v380 = vunpack.c.l.b16 %v172
  %v381 = vunpack.c.h.b16 %v172
  %v382 = vunpack.c.l.b16 %v173
  %v383 = vunpack.c.h.b16 %v173
  %v384 = vunpack.c.l.b16 %v174
  %v385 = vunpack.c.h.b16 %v174
  %v386 = vunpack.c.l.b16 %v175
  %v387 = vunpack.c.h.b16 %v175
  %v388 = vunpack.c.l.b16 %v176
  %v389 = vunpack.c.h.b16 %v176
  %v390 = vunpack.c.l.b16 %v177
  %v391 = vunpack.c.h.b16 %v177
  %v392 = vunpack.c.l.b16 %v178
  %v393 = vunpack.c.h.b16 %v178
  %v394 = vunpack.c.l.b16 %v179
  %v395 = vunpack.c.h.b16 %v179
  %v396 = vpack.c.b16 %v254, %v252
  %v397 = vpack.c.b16 %v255, %v253
  %v398 = vpack.c.b16 %v258, %v256
  %v399 = vpack.c.b16 %v259, %v257
  %v400 = vpack.c.b16 %v262, %v260
  %v401 = vpack.c.b16 %v263, %v261
  %v402 = vpack.c.b16 %v266, %v264
  %v403 = vpack.c.b16 %v267, %v265
  %v404 = vpack.c.b16 %v270, %v268
  %v405 = vpack.c.b16 %v271, %v269
  %v406 = vpack.c.b16 %v274, %v272
  %v407 = vpack.c.b16 %v275, %v273
  %v408 = vpack.c.b16 %v278, %v276
  %v409 = vpack.c.b16 %v279, %v277
  %v410 = vpack.c.b16 %v282, %v280
  %v411 = vpack.c.b16 %v283, %v281
  %v412 = vpack.c.b16 %v286, %v284
  %v413 = vpack.c.b16 %v287, %v285
  %v414 = vpack.c.b16 %v290, %v288
  %v415 = vpack.c.b16 %v291, %v289
  %v416 = vpack.c.b16 %v294, %v292
  %v417 = vpack.c.b16 %v295, %v293
  %v418 = vpack.c.b16 %v298, %v296
  %v419 = vpack.c.b16 %v299, %v297
  %v420 = vpack.c.b16 %v302, %v300
  %v421 = vpack.c.b16 %v303, %v301
  %v422 = vpack.c.b16 %v306, %v304
  %v423 = vpack.c.b16 %v307, %v305
  %v424 = vpack.c.b16 %v310, %v308
  %v425 = vpack.c.b16 %v311, %v309
  %v426 = vpack.c.b16 %v314, %v312
  %v427 = vpack.c.b16 %v315, %v313
  %v428 = vpack.c.b16 %v318, %v316
  %v429 = vpack.c.b16 %v319, %v317
  %v430 = vpack.c.b16 %v322, %v320
  %v431 = vpack.c.b16 %v323, %v321
  %v432 = vpack.c.b16 %v326, %v324
  %v433 = vpack.c.b16 %v327, %v325
  %v434 = vpack.c.b16 %v330, %v328
  %v435 = vpack.c.b16 %v331, %v329
  %v436 = vpack.c.b16 %v334, %v332
  %v437 = vpack.c.b16 %v335, %v333
  %v438 = vpack.c.b16 %v338, %v336
  %v439 = vpack.c.b16 %v339, %v337
  %v440 = vpack.c.b16 %v342, %v340
  %v441 = vpack.c.b16 %v343, %v341
  %v442 = vpack.c.b16 %v346, %v344
  %v443 = vpack.c.b16 %v347, %v345
  %v444 = vpack.c.b16 %v350, %v348
  %v445 = vpack.c.b16 %v351, %v349
  %v446 = vpack.c.b16 %v354, %v352
  %v447 = vpack.c.b16 %v355, %v353
  %v448 = vpack.c.b16 %v358, %v356
  %v449 = vpack.c.b16 %v359, %v357
  %v450 = vpack.c.b16 %v362, %v360
  %v451 = vpack.c.b16 %v363, %v361
  %v452 = vpack.c.b16 %v366, %v364
  %v453 = vpack.c.b16 %v367, %v365
  %v454 = vpack.c.b16 %v370, %v368
  %v455 = vpack.c.b16 %v371, %v369
  %v456 = vpack.c.b16 %v374, %v372
  %v457 = vpack.c.b16 %v375, %v373
  %v458 = vpack.c.b16 %v378, %v376
  %v459 = vpack.c.b16 %v379, %v377
  %v460 = vpack.c.b16 %v382, %v380
  %v461 = vpack.c.b16 %v383, %v381
  %v462 = vpack.c.b16 %v386, %v384
  %v463 = vpack.c.b16 %v387, %v385
  %v464 = vpack.c.b16 %v390, %v388
  %v465 = vpack.c.b16 %v391, %v389
  %v466 = vpack.c.b16 %v394, %v392
  %v467 = vpack.c.b16 %v395, %v393
  %vm540 = vcmask 523264
  %v542 = vsel %vm540, %v92, 0
  %v545 = vsel %vm540, %v97, 0
  %v548 = vsel %vm540, %v102, 0
  %v551 = vsel %vm540, %v107, 0
  %553 = vmatpush.bf16.msra.mxu0 %v410
  %554 = vmatpush.bf16.msra.mxu0 %v408
  %555 = vmatpush.bf16.msra.mxu0 %v406
  %556 = vmatpush.bf16.msra.mxu0 %v404
  %557 = vmatpush.bf16.msra.mxu0 %v402
  %558 = vmatpush.bf16.msra.mxu0 %v400
  %559 = vmatpush.bf16.msra.mxu0 %v398
  %560 = vmatpush.bf16.msra.mxu0 %v396
  %561 = vmatmul.bf16.gmra.mxu0 %v88
  %v562 = vpop.f32.mrf.mxu0
  %v563 = vadd.f32 0.0, %v562
  %v564 = vpop.f32.mrf.mxu0
  %v565 = vadd.f32 0.0, %v564
  %566 = vmatmul.bf16.gmra.mxu0 %v93
  %v567 = vpop.f32.mrf.mxu0
  %v568 = vadd.f32 0.0, %v567
  %v569 = vpop.f32.mrf.mxu0
  %v570 = vadd.f32 0.0, %v569
  %571 = vmatmul.bf16.gmra.mxu0 %v98
  %v572 = vpop.f32.mrf.mxu0
  %v573 = vadd.f32 0.0, %v572
  %v574 = vpop.f32.mrf.mxu0
  %v575 = vadd.f32 0.0, %v574
  %576 = vmatmul.bf16.gmra.mxu0 %v103
  %v577 = vpop.f32.mrf.mxu0
  %v578 = vadd.f32 0.0, %v577
  %v579 = vpop.f32.mrf.mxu0
  %580 = vdwg.mxu0
  %581 = vmatpush.bf16.msra.mxu0 %v426
  %582 = vmatpush.bf16.msra.mxu0 %v424
  %583 = vmatpush.bf16.msra.mxu0 %v422
  %584 = vmatpush.bf16.msra.mxu0 %v420
  %585 = vmatpush.bf16.msra.mxu0 %v418
  %586 = vmatpush.bf16.msra.mxu0 %v416
  %587 = vmatpush.bf16.msra.mxu0 %v414
  %588 = vmatpush.bf16.msra.mxu0 %v412
  %589 = vmatmul.bf16.gmra.mxu0 %v89
  %v590 = vpop.f32.mrf.mxu0
  %v591 = vadd.f32 %v563, %v590
  %v592 = vpop.f32.mrf.mxu0
  %v593 = vadd.f32 %v565, %v592
  %594 = vmatmul.bf16.gmra.mxu0 %v94
  %v595 = vpop.f32.mrf.mxu0
  %v596 = vadd.f32 %v568, %v595
  %v597 = vpop.f32.mrf.mxu0
  %v598 = vadd.f32 %v570, %v597
  %599 = vmatmul.bf16.gmra.mxu0 %v99
  %v600 = vpop.f32.mrf.mxu0
  %v601 = vadd.f32 %v573, %v600
  %v602 = vpop.f32.mrf.mxu0
  %v603 = vadd.f32 %v575, %v602
  %604 = vmatmul.bf16.gmra.mxu0 %v104
  %v605 = vpop.f32.mrf.mxu0
  %v606 = vadd.f32 %v578, %v605
  %v607 = vpop.f32.mrf.mxu0
  %608 = vdwg.mxu0
  %609 = vmatpush.bf16.msra.mxu0 %v442
  %610 = vmatpush.bf16.msra.mxu0 %v440
  %611 = vmatpush.bf16.msra.mxu0 %v438
  %612 = vmatpush.bf16.msra.mxu0 %v436
  %613 = vmatpush.bf16.msra.mxu0 %v434
  %614 = vmatpush.bf16.msra.mxu0 %v432
  %615 = vmatpush.bf16.msra.mxu0 %v430
  %616 = vmatpush.bf16.msra.mxu0 %v428
  %617 = vmatmul.bf16.gmra.mxu0 %v90
  %v618 = vpop.f32.mrf.mxu0
  %v619 = vadd.f32 %v591, %v618
  %v620 = vpop.f32.mrf.mxu0
  %v621 = vadd.f32 %v593, %v620
  %622 = vmatmul.bf16.gmra.mxu0 %v95
  %v623 = vpop.f32.mrf.mxu0
  %v624 = vadd.f32 %v596, %v623
  %v625 = vpop.f32.mrf.mxu0
  %v626 = vadd.f32 %v598, %v625
  %627 = vmatmul.bf16.gmra.mxu0 %v100
  %v628 = vpop.f32.mrf.mxu0
  %v629 = vadd.f32 %v601, %v628
  %v630 = vpop.f32.mrf.mxu0
  %v631 = vadd.f32 %v603, %v630
  %632 = vmatmul.bf16.gmra.mxu0 %v105
  %v633 = vpop.f32.mrf.mxu0
  %v634 = vadd.f32 %v606, %v633
  %v635 = vpop.f32.mrf.mxu0
  %636 = vdwg.mxu0
  %637 = vmatpush.bf16.msra.mxu0 %v458
  %638 = vmatpush.bf16.msra.mxu0 %v456
  %639 = vmatpush.bf16.msra.mxu0 %v454
  %640 = vmatpush.bf16.msra.mxu0 %v452
  %641 = vmatpush.bf16.msra.mxu0 %v450
  %642 = vmatpush.bf16.msra.mxu0 %v448
  %643 = vmatpush.bf16.msra.mxu0 %v446
  %644 = vmatpush.bf16.msra.mxu0 %v444
  %645 = vmatmul.bf16.gmra.mxu0 %v91
  %v646 = vpop.f32.mrf.mxu0
  %v647 = vadd.f32 %v619, %v646
  %v648 = vpop.f32.mrf.mxu0
  %v649 = vadd.f32 %v621, %v648
  %650 = vmatmul.bf16.gmra.mxu0 %v96
  %v651 = vpop.f32.mrf.mxu0
  %v652 = vadd.f32 %v624, %v651
  %v653 = vpop.f32.mrf.mxu0
  %v654 = vadd.f32 %v626, %v653
  %655 = vmatmul.bf16.gmra.mxu0 %v101
  %v656 = vpop.f32.mrf.mxu0
  %v657 = vadd.f32 %v629, %v656
  %v658 = vpop.f32.mrf.mxu0
  %v659 = vadd.f32 %v631, %v658
  %660 = vmatmul.bf16.gmra.mxu0 %v106
  %v661 = vpop.f32.mrf.mxu0
  %v662 = vadd.f32 %v634, %v661
  %v663 = vpop.f32.mrf.mxu0
  %664 = vdwg.mxu0
  %665 = vmatpush.bf16.msra.mxu0 0
  %666 = vmatpush.bf16.msra.mxu0 0
  %667 = vmatpush.bf16.msra.mxu0 0
  %668 = vmatpush.bf16.msra.mxu0 0
  %669 = vmatpush.bf16.msra.mxu0 %v466
  %670 = vmatpush.bf16.msra.mxu0 %v464
  %671 = vmatpush.bf16.msra.mxu0 %v462
  %672 = vmatpush.bf16.msra.mxu0 %v460
  %673 = vmatmul.bf16.gmra.mxu0 %v542
  %v674 = vpop.f32.mrf.mxu0
  %v675 = vadd.f32 %v647, %v674
  %v676 = vpop.f32.mrf.mxu0
  %v677 = vadd.f32 %v649, %v676
  %678 = vmatmul.bf16.gmra.mxu0 %v545
  %v679 = vpop.f32.mrf.mxu0
  %v680 = vadd.f32 %v652, %v679
  %v681 = vpop.f32.mrf.mxu0
  %v682 = vadd.f32 %v654, %v681
  %683 = vmatmul.bf16.gmra.mxu0 %v548
  %v684 = vpop.f32.mrf.mxu0
  %v685 = vadd.f32 %v657, %v684
  %v686 = vpop.f32.mrf.mxu0
  %v687 = vadd.f32 %v659, %v686
  %688 = vmatmul.bf16.gmra.mxu0 %v551
  %v689 = vpop.f32.mrf.mxu0
  %v690 = vadd.f32 %v662, %v689
  %v691 = vpop.f32.mrf.mxu0
  %692 = vdwg.mxu0
  %693 = vmatpush.bf16.msra.mxu0 %v411
  %694 = vmatpush.bf16.msra.mxu0 %v409
  %695 = vmatpush.bf16.msra.mxu0 %v407
  %696 = vmatpush.bf16.msra.mxu0 %v405
  %697 = vmatpush.bf16.msra.mxu0 %v403
  %698 = vmatpush.bf16.msra.mxu0 %v401
  %699 = vmatpush.bf16.msra.mxu0 %v399
  %700 = vmatpush.bf16.msra.mxu0 %v397
  %701 = vmatmul.bf16.gmra.mxu0 %v88
  %v702 = vpop.f32.mrf.mxu0
  %v703 = vadd.f32 0.0, %v702
  %v704 = vpop.f32.mrf.mxu0
  %v705 = vadd.f32 0.0, %v704
  %706 = vmatmul.bf16.gmra.mxu0 %v93
  %v707 = vpop.f32.mrf.mxu0
  %v708 = vadd.f32 0.0, %v707
  %v709 = vpop.f32.mrf.mxu0
  %v710 = vadd.f32 0.0, %v709
  %711 = vmatmul.bf16.gmra.mxu0 %v98
  %v712 = vpop.f32.mrf.mxu0
  %v713 = vadd.f32 0.0, %v712
  %v714 = vpop.f32.mrf.mxu0
  %v715 = vadd.f32 0.0, %v714
  %716 = vmatmul.bf16.gmra.mxu0 %v103
  %v717 = vpop.f32.mrf.mxu0
  %v718 = vadd.f32 0.0, %v717
  %v719 = vpop.f32.mrf.mxu0
  %720 = vdwg.mxu0
  %721 = vmatpush.bf16.msra.mxu0 %v427
  %722 = vmatpush.bf16.msra.mxu0 %v425
  %723 = vmatpush.bf16.msra.mxu0 %v423
  %724 = vmatpush.bf16.msra.mxu0 %v421
  %725 = vmatpush.bf16.msra.mxu0 %v419
  %726 = vmatpush.bf16.msra.mxu0 %v417
  %727 = vmatpush.bf16.msra.mxu0 %v415
  %728 = vmatpush.bf16.msra.mxu0 %v413
  %729 = vmatmul.bf16.gmra.mxu0 %v89
  %v730 = vpop.f32.mrf.mxu0
  %v731 = vadd.f32 %v703, %v730
  %v732 = vpop.f32.mrf.mxu0
  %v733 = vadd.f32 %v705, %v732
  %734 = vmatmul.bf16.gmra.mxu0 %v94
  %v735 = vpop.f32.mrf.mxu0
  %v736 = vadd.f32 %v708, %v735
  %v737 = vpop.f32.mrf.mxu0
  %v738 = vadd.f32 %v710, %v737
  %739 = vmatmul.bf16.gmra.mxu0 %v99
  %v740 = vpop.f32.mrf.mxu0
  %v741 = vadd.f32 %v713, %v740
  %v742 = vpop.f32.mrf.mxu0
  %v743 = vadd.f32 %v715, %v742
  %744 = vmatmul.bf16.gmra.mxu0 %v104
  %v745 = vpop.f32.mrf.mxu0
  %v746 = vadd.f32 %v718, %v745
  %v747 = vpop.f32.mrf.mxu0
  %748 = vdwg.mxu0
  %749 = vmatpush.bf16.msra.mxu0 %v443
  %750 = vmatpush.bf16.msra.mxu0 %v441
  %751 = vmatpush.bf16.msra.mxu0 %v439
  %752 = vmatpush.bf16.msra.mxu0 %v437
  %753 = vmatpush.bf16.msra.mxu0 %v435
  %754 = vmatpush.bf16.msra.mxu0 %v433
  %755 = vmatpush.bf16.msra.mxu0 %v431
  %756 = vmatpush.bf16.msra.mxu0 %v429
  %757 = vmatmul.bf16.gmra.mxu0 %v90
  %v758 = vpop.f32.mrf.mxu0
  %v759 = vadd.f32 %v731, %v758
  %v760 = vpop.f32.mrf.mxu0
  %v761 = vadd.f32 %v733, %v760
  %762 = vmatmul.bf16.gmra.mxu0 %v95
  %v763 = vpop.f32.mrf.mxu0
  %v764 = vadd.f32 %v736, %v763
  %v765 = vpop.f32.mrf.mxu0
  %v766 = vadd.f32 %v738, %v765
  %767 = vmatmul.bf16.gmra.mxu0 %v100
  %v768 = vpop.f32.mrf.mxu0
  %v769 = vadd.f32 %v741, %v768
  %v770 = vpop.f32.mrf.mxu0
  %v771 = vadd.f32 %v743, %v770
  %772 = vmatmul.bf16.gmra.mxu0 %v105
  %v773 = vpop.f32.mrf.mxu0
  %v774 = vadd.f32 %v746, %v773
  %v775 = vpop.f32.mrf.mxu0
  %776 = vdwg.mxu0
  %777 = vmatpush.bf16.msra.mxu0 %v459
  %778 = vmatpush.bf16.msra.mxu0 %v457
  %779 = vmatpush.bf16.msra.mxu0 %v455
  %780 = vmatpush.bf16.msra.mxu0 %v453
  %781 = vmatpush.bf16.msra.mxu0 %v451
  %782 = vmatpush.bf16.msra.mxu0 %v449
  %783 = vmatpush.bf16.msra.mxu0 %v447
  %784 = vmatpush.bf16.msra.mxu0 %v445
  %785 = vmatmul.bf16.gmra.mxu0 %v91
  %v786 = vpop.f32.mrf.mxu0
  %v787 = vadd.f32 %v759, %v786
  %v788 = vpop.f32.mrf.mxu0
  %v789 = vadd.f32 %v761, %v788
  %790 = vmatmul.bf16.gmra.mxu0 %v96
  %v791 = vpop.f32.mrf.mxu0
  %v792 = vadd.f32 %v764, %v791
  %v793 = vpop.f32.mrf.mxu0
  %v794 = vadd.f32 %v766, %v793
  %795 = vmatmul.bf16.gmra.mxu0 %v101
  %v796 = vpop.f32.mrf.mxu0
  %v797 = vadd.f32 %v769, %v796
  %v798 = vpop.f32.mrf.mxu0
  %v799 = vadd.f32 %v771, %v798
  %800 = vmatmul.bf16.gmra.mxu0 %v106
  %v801 = vpop.f32.mrf.mxu0
  %v802 = vadd.f32 %v774, %v801
  %v803 = vpop.f32.mrf.mxu0
  %804 = vdwg.mxu0
  %805 = vmatpush.bf16.msra.mxu0 0
  %806 = vmatpush.bf16.msra.mxu0 0
  %807 = vmatpush.bf16.msra.mxu0 0
  %808 = vmatpush.bf16.msra.mxu0 0
  %809 = vmatpush.bf16.msra.mxu0 %v467
  %810 = vmatpush.bf16.msra.mxu0 %v465
  %811 = vmatpush.bf16.msra.mxu0 %v463
  %812 = vmatpush.bf16.msra.mxu0 %v461
  %813 = vmatmul.bf16.gmra.mxu0 %v542
  %v814 = vpop.f32.mrf.mxu0
  %v815 = vadd.f32 %v787, %v814
  %v816 = vpop.f32.mrf.mxu0
  %v817 = vadd.f32 %v789, %v816
  %818 = vmatmul.bf16.gmra.mxu0 %v545
  %v819 = vpop.f32.mrf.mxu0
  %v820 = vadd.f32 %v792, %v819
  %v821 = vpop.f32.mrf.mxu0
  %v822 = vadd.f32 %v794, %v821
  %823 = vmatmul.bf16.gmra.mxu0 %v548
  %v824 = vpop.f32.mrf.mxu0
  %v825 = vadd.f32 %v797, %v824
  %v826 = vpop.f32.mrf.mxu0
  %v827 = vadd.f32 %v799, %v826
  %828 = vmatmul.bf16.gmra.mxu0 %v551
  %v829 = vpop.f32.mrf.mxu0
  %v830 = vadd.f32 %v802, %v829
  %v831 = vpop.f32.mrf.mxu0
  %832 = vdwg.mxu0
  %v833 = vadd.f32 %v675, %v677
  %v834 = vadd.f32 %v833, %v680
  %v835 = vadd.f32 %v834, %v682
  %v836 = vadd.f32 %v835, %v685
  %v837 = vadd.f32 %v836, %v687
  %vm838 = vcmask 1040384
  %v839 = vsel %vm838, %v690, 0.0
  %v840 = vadd.f32 %v837, %v839
  %v841 = vrot.slane %v840, 4
  %v842 = vadd.f32 %v840, %v841
  %v843 = vrot.slane %v842, 2
  %v844 = vadd.f32 %v842, %v843
  %v845 = vrot.slane %v844, 1
  %v846 = vadd.f32 %v844, %v845
  %vm847 = vcmask 261120
  %v848 = vsel %vm847, %v815, 0.0
  %v849 = vsel %vm847, %v817, 0.0
  %v850 = vadd.f32 %v848, %v849
  %v851 = vsel %vm847, %v820, 0.0
  %v852 = vadd.f32 %v850, %v851
  %v853 = vsel %vm847, %v822, 0.0
  %v854 = vadd.f32 %v852, %v853
  %v855 = vsel %vm847, %v825, 0.0
  %v856 = vadd.f32 %v854, %v855
  %v857 = vsel %vm847, %v827, 0.0
  %v858 = vadd.f32 %v856, %v857
  %vm859 = vcmask 253952
  %v860 = vsel %vm859, %v830, 0.0
  %v861 = vadd.f32 %v858, %v860
  %v862 = vrot.slane %v861, 4
  %v863 = vadd.f32 %v861, %v862
  %v864 = vrot.slane %v863, 2
  %v865 = vadd.f32 %v863, %v864
  %v866 = vrot.slane %v865, 1
  %v867 = vadd.f32 %v865, %v866
  %v868 = vmul.f32 %v846, 0.020408163
  %v869 = vmul.f32 %v867, 0.020408163
  %v870 = vsub.f32 %v675, %v868
  %v871 = vsub.f32 %v815, %v869
  %v872 = vsub.f32 %v677, %v868
  %v873 = vsub.f32 %v817, %v869
  %v874 = vsub.f32 %v680, %v868
  %v875 = vsub.f32 %v820, %v869
  %v876 = vsub.f32 %v682, %v868
  %v877 = vsub.f32 %v822, %v869
  %v878 = vsub.f32 %v685, %v868
  %v879 = vsub.f32 %v825, %v869
  %v880 = vsub.f32 %v687, %v868
  %v881 = vsub.f32 %v827, %v869
  %v882 = vsub.f32 %v690, %v868
  %v883 = vsub.f32 %v830, %v869
  %v884 = vmul.f32 %v870, %v870
  %v885 = vmul.f32 %v871, %v871
  %v886 = vmul.f32 %v872, %v872
  %v887 = vmul.f32 %v873, %v873
  %v888 = vmul.f32 %v874, %v874
  %v889 = vmul.f32 %v875, %v875
  %v890 = vmul.f32 %v876, %v876
  %v891 = vmul.f32 %v877, %v877
  %v892 = vmul.f32 %v878, %v878
  %v893 = vmul.f32 %v879, %v879
  %v894 = vmul.f32 %v880, %v880
  %v895 = vmul.f32 %v881, %v881
  %v896 = vmul.f32 %v882, %v882
  %v897 = vmul.f32 %v883, %v883
  %v898 = vadd.f32 %v884, %v886
  %v899 = vadd.f32 %v898, %v888
  %v900 = vadd.f32 %v899, %v890
  %v901 = vadd.f32 %v900, %v892
  %v902 = vadd.f32 %v901, %v894
  %v903 = vsel %vm838, %v896, 0.0
  %v904 = vadd.f32 %v902, %v903
  %v905 = vrot.slane %v904, 4
  %v906 = vadd.f32 %v904, %v905
  %v907 = vrot.slane %v906, 2
  %v908 = vadd.f32 %v906, %v907
  %v909 = vrot.slane %v908, 1
  %v910 = vadd.f32 %v908, %v909
  %v911 = vsel %vm847, %v885, 0.0
  %v912 = vsel %vm847, %v887, 0.0
  %v913 = vadd.f32 %v911, %v912
  %v914 = vsel %vm847, %v889, 0.0
  %v915 = vadd.f32 %v913, %v914
  %v916 = vsel %vm847, %v891, 0.0
  %v917 = vadd.f32 %v915, %v916
  %v918 = vsel %vm847, %v893, 0.0
  %v919 = vadd.f32 %v917, %v918
  %v920 = vsel %vm847, %v895, 0.0
  %v921 = vadd.f32 %v919, %v920
  %v922 = vsel %vm859, %v897, 0.0
  %v923 = vadd.f32 %v921, %v922
  %v924 = vrot.slane %v923, 4
  %v925 = vadd.f32 %v923, %v924
  %v926 = vrot.slane %v925, 2
  %v927 = vadd.f32 %v925, %v926
  %v928 = vrot.slane %v927, 1
  %v929 = vadd.f32 %v927, %v928
  %v930 = vmul.f32 %v910, 0.020408163
  %v931 = vmul.f32 %v929, 0.020408163
  %v932 = vld [vmem:[%s2] ss:$2 sm:$0x3]
  %s933 = scalar_lea.vmem %s2, 1
  %v934 = vld [vmem:[%s933] ss:$2 sm:$0x3]
  %v935 = vadd.f32 %v930, 1e-05
  %v936 = vadd.f32 %v931, 1e-05
  %v937 = vrsqrt.pop %v935
  %v938 = vmul.f32 %v937, %v935
  %v939 = vmul.f32 %v938, %v937
  %v940 = vmul.f32 0.5, %v939
  %v941 = vsub.f32 1.5, %v940
  %v942 = vmul.f32 %v937, %v941
  %vm943 = vweird.f32 %v935
  %vm944 = vweird.f32 %v937
  %vm945 = vmor %vm943, %vm944
  %v946 = vsel %vm945, %v937, %v942
  %v947 = vrsqrt.pop %v936
  %v948 = vmul.f32 %v947, %v936
  %v949 = vmul.f32 %v948, %v947
  %v950 = vmul.f32 0.5, %v949
  %v951 = vsub.f32 1.5, %v950
  %v952 = vmul.f32 %v947, %v951
  %vm953 = vweird.f32 %v936
  %vm954 = vweird.f32 %v947
  %vm955 = vmor %vm953, %vm954
  %v956 = vsel %vm955, %v947, %v952
  %v959 = vrot.slane %v956, 7
  %v960 = vsel %vm838, %v946, %v959
  %v962 = vmul.f32 %v932, %v960
  %v964 = vperm.slane %v962, 0
  %v965 = vperm.slane %v962, 1
  %v968 = vmul.f32 %v870, %v964
  %v969 = vmul.f32 %v871, %v965
  %v970 = vmul.f32 %v872, %v964
  %v971 = vmul.f32 %v873, %v965
  %v972 = vmul.f32 %v874, %v964
  %v973 = vmul.f32 %v875, %v965
  %v974 = vmul.f32 %v876, %v964
  %v975 = vmul.f32 %v877, %v965
  %v976 = vmul.f32 %v878, %v964
  %v977 = vmul.f32 %v879, %v965
  %v978 = vmul.f32 %v880, %v964
  %v979 = vmul.f32 %v881, %v965
  %v980 = vmul.f32 %v882, %v964
  %v981 = vmul.f32 %v883, %v965
  %v983 = vperm.slane %v934, 0
  %v984 = vperm.slane %v934, 1
  %v987 = vadd.f32 %v968, %v983
  %v988 = vadd.f32 %v969, %v984
  %v989 = vadd.f32 %v970, %v983
  %v990 = vadd.f32 %v971, %v984
  %v991 = vadd.f32 %v972, %v983
  %v992 = vadd.f32 %v973, %v984
  %v993 = vadd.f32 %v974, %v983
  %v994 = vadd.f32 %v975, %v984
  %v995 = vadd.f32 %v976, %v983
  %v996 = vadd.f32 %v977, %v984
  %v997 = vadd.f32 %v978, %v983
  %v998 = vadd.f32 %v979, %v984
  %v999 = vadd.f32 %v980, %v983
  %v1000 = vadd.f32 %v981, %v984
  %v1001 = vpack.c.bf16 %v989, %v987
  %v1002 = vpack.c.bf16 %v990, %v988
  %v1003 = vpack.c.bf16 %v993, %v991
  %v1004 = vpack.c.bf16 %v994, %v992
  %v1005 = vpack.c.bf16 %v997, %v995
  %v1006 = vpack.c.bf16 %v998, %v996
  %v1007 = vpack.c.bf16 %v999, %v999
  %v1008 = vpack.c.bf16 %v1000, %v1000
  %v1009 = vld [vmem:[%s3] sm:$0xff]
  %v1010 = vld [vmem:[%s3 + $0x8] sm:$0xff]
  %v1011 = vld [vmem:[%s3 + $0x10] sm:$0xff]
  %v1012 = vld [vmem:[%s3 + $0x18] sm:$0xff]
  %v1013 = vld [vmem:[%s3 + $0x20] sm:$0xff]
  %v1014 = vld [vmem:[%s3 + $0x28] sm:$0xff]
  %v1015 = vld [vmem:[%s3 + $0x30] sm:$0xff]
  %v1016 = vld [vmem:[%s3 + $0x38] sm:$0xff]
  %v1017 = vld [vmem:[%s3 + $0x40] sm:$0xff]
  %v1018 = vld [vmem:[%s3 + $0x48] sm:$0xff]
  %v1019 = vld [vmem:[%s3 + $0x50] sm:$0xff]
  %v1020 = vld [vmem:[%s3 + $0x58] sm:$0xff]
  %v1021 = vld [vmem:[%s3 + $0x60] sm:$0xff]
  %v1022 = vld [vmem:[%s3 + $0x68] sm:$0xff]
  %v1023 = vld [vmem:[%s3 + $0x70] sm:$0xff]
  %v1024 = vld [vmem:[%s3 + $0x78] sm:$0xff]
  %v1025 = vld [vmem:[%s3 + $0x80] sm:$0xff]
  %v1026 = vld [vmem:[%s3 + $0x88] sm:$0xff]
  %v1027 = vld [vmem:[%s3 + $0x90] sm:$0xff]
  %v1028 = vld [vmem:[%s3 + $0x98] sm:$0xff]
  %v1029 = vld [vmem:[%s3 + $0xa0] sm:$0xff]
  %v1030 = vld [vmem:[%s3 + $0xa8] sm:$0xff]
  %v1031 = vld [vmem:[%s3 + $0xb0] sm:$0xff]
  %v1032 = vld [vmem:[%s3 + $0xb8] sm:$0xff]
  %v1033 = vld [vmem:[%s3 + $0xc0] sm:$0xff]
  %v1034 = vld [vmem:[%s3 + $0xc8] sm:$0xff]
  %v1035 = vld [vmem:[%s3 + $0xd0] sm:$0xff]
  %v1036 = vld [vmem:[%s3 + $0xd8] sm:$0xff]
  %v1037 = vld [vmem:[%s3 + $0xe0] sm:$0xff]
  %v1038 = vld [vmem:[%s3 + $0xe8] sm:$0xff]
  %v1039 = vld [vmem:[%s3 + $0xf0] sm:$0xff]
  %v1040 = vld [vmem:[%s3 + $0xf8] sm:$0xff]
  %v1041 = vld [vmem:[%s3 + $0x100] sm:$0xff]
  %v1042 = vld [vmem:[%s3 + $0x108] sm:$0xff]
  %v1043 = vld [vmem:[%s3 + $0x110] sm:$0xff]
  %v1044 = vld [vmem:[%s3 + $0x118] sm:$0xff]
  %v1045 = vld [vmem:[%s3 + $0x120] sm:$0xff]
  %v1046 = vld [vmem:[%s3 + $0x128] sm:$0xff]
  %v1047 = vld [vmem:[%s3 + $0x130] sm:$0xff]
  %v1048 = vld [vmem:[%s3 + $0x138] sm:$0xff]
  %v1049 = vld [vmem:[%s3 + $0x140] sm:$0xff]
  %v1050 = vld [vmem:[%s3 + $0x148] sm:$0xff]
  %v1051 = vld [vmem:[%s3 + $0x150] sm:$0xff]
  %v1052 = vld [vmem:[%s3 + $0x158] sm:$0xff]
  %v1053 = vld [vmem:[%s3 + $0x160] sm:$0xff]
  %v1054 = vld [vmem:[%s3 + $0x168] sm:$0xff]
  %v1055 = vld [vmem:[%s3 + $0x170] sm:$0xff]
  %v1056 = vld [vmem:[%s3 + $0x178] sm:$0xff]
  %v1057 = vld [vmem:[%s3 + $0x180] sm:$0xff]
  %v1058 = vld [vmem:[%s3 + $0x188] sm:$0xff]
  %v1059 = vld [vmem:[%s3 + $0x190] sm:$0xff]
  %v1060 = vld [vmem:[%s3 + $0x198] sm:$0xff]
  %v1061 = vld [vmem:[%s3 + $0x1a0] sm:$0xff]
  %v1062 = vld [vmem:[%s3 + $0x1a8] sm:$0xff]
  %v1063 = vld [vmem:[%s3 + $0x1b0] sm:$0xff]
  %v1064 = vld [vmem:[%s3 + $0x1b8] sm:$0xff]
  %v1065 = vld [vmem:[%s3 + $0x1c0] sm:$0xff]
  %v1066 = vld [vmem:[%s3 + $0x1c8] sm:$0xff]
  %v1067 = vld [vmem:[%s3 + $0x1d0] sm:$0xff]
  %v1068 = vld [vmem:[%s3 + $0x1d8] sm:$0xff]
  %v1069 = vld [vmem:[%s3 + $0x1e0] sm:$0xff]
  %v1070 = vld [vmem:[%s3 + $0x1e8] sm:$0xff]
  %v1071 = vld [vmem:[%s3 + $0x1f0] sm:$0xff]
  %v1072 = vld [vmem:[%s3 + $0x1f8] sm:$0xff]
  %v1073 = vld [vmem:[%s3 + $0x200] sm:$0xff]
  %v1074 = vld [vmem:[%s3 + $0x208] sm:$0xff]
  %v1075 = vld [vmem:[%s3 + $0x210] sm:$0xff]
  %v1076 = vld [vmem:[%s3 + $0x218] sm:$0xff]
  %v1077 = vld [vmem:[%s3 + $0x220] sm:$0xff]
  %v1078 = vld [vmem:[%s3 + $0x228] sm:$0xff]
  %v1079 = vld [vmem:[%s3 + $0x230] sm:$0xff]
  %v1080 = vld [vmem:[%s3 + $0x238] sm:$0xff]
  %v1081 = vld [vmem:[%s3 + $0x240] sm:$0xff]
  %v1082 = vld [vmem:[%s3 + $0x248] sm:$0xff]
  %v1083 = vld [vmem:[%s3 + $0x250] sm:$0xff]
  %v1084 = vld [vmem:[%s3 + $0x258] sm:$0xff]
  %v1085 = vld [vmem:[%s3 + $0x260] sm:$0xff]
  %v1086 = vld [vmem:[%s3 + $0x268] sm:$0xff]
  %v1087 = vld [vmem:[%s3 + $0x270] sm:$0xff]
  %v1088 = vld [vmem:[%s3 + $0x278] sm:$0xff]
  %v1089 = vld [vmem:[%s3 + $0x280] sm:$0xff]
  %v1090 = vld [vmem:[%s3 + $0x288] sm:$0xff]
  %v1091 = vld [vmem:[%s3 + $0x290] sm:$0xff]
  %v1092 = vld [vmem:[%s3 + $0x298] sm:$0xff]
  %v1093 = vld [vmem:[%s3 + $0x2a0] sm:$0xff]
  %v1094 = vld [vmem:[%s3 + $0x2a8] sm:$0xff]
  %v1095 = vld [vmem:[%s3 + $0x2b0] sm:$0xff]
  %v1096 = vld [vmem:[%s3 + $0x2b8] sm:$0xff]
  %v1097 = vld [vmem:[%s3 + $0x2c0] sm:$0xff]
  %v1098 = vld [vmem:[%s3 + $0x2c8] sm:$0xff]
  %v1099 = vld [vmem:[%s3 + $0x2d0] sm:$0xff]
  %v1100 = vld [vmem:[%s3 + $0x2d8] sm:$0xff]
  %v1101 = vld [vmem:[%s3 + $0x2e0] sm:$0xff]
  %v1102 = vld [vmem:[%s3 + $0x2e8] sm:$0xff]
  %v1103 = vld [vmem:[%s3 + $0x2f0] sm:$0xff]
  %v1104 = vld [vmem:[%s3 + $0x2f8] sm:$0xff]
  %v1105 = vld [vmem:[%s3 + $0x300] sm:$0xff]
  %v1106 = vld [vmem:[%s3 + $0x308] sm:$0xff]
  %v1107 = vld [vmem:[%s3 + $0x310] sm:$0xff]
  %v1108 = vld [vmem:[%s3 + $0x318] sm:$0xff]
  %v1209 = vunpack.c.l.b16 %v1009
  %v1210 = vunpack.c.h.b16 %v1009
  %v1211 = vunpack.c.l.b16 %v1010
  %v1212 = vunpack.c.h.b16 %v1010
  %v1213 = vunpack.c.l.b16 %v1011
  %v1214 = vunpack.c.h.b16 %v1011
  %v1215 = vunpack.c.l.b16 %v1012
  %v1216 = vunpack.c.h.b16 %v1012
  %v1217 = vunpack.c.l.b16 %v1013
  %v1218 = vunpack.c.h.b16 %v1013
  %v1219 = vunpack.c.l.b16 %v1014
  %v1220 = vunpack.c.h.b16 %v1014
  %v1221 = vunpack.c.l.b16 %v1015
  %v1222 = vunpack.c.h.b16 %v1015
  %v1223 = vunpack.c.l.b16 %v1016
  %v1224 = vunpack.c.h.b16 %v1016
  %v1225 = vunpack.c.l.b16 %v1017
  %v1226 = vunpack.c.h.b16 %v1017
  %v1227 = vunpack.c.l.b16 %v1018
  %v1228 = vunpack.c.h.b16 %v1018
  %v1229 = vunpack.c.l.b16 %v1019
  %v1230 = vunpack.c.h.b16 %v1019
  %v1231 = vunpack.c.l.b16 %v1020
  %v1232 = vunpack.c.h.b16 %v1020
  %v1233 = vunpack.c.l.b16 %v1021
  %v1234 = vunpack.c.h.b16 %v1021
  %v1235 = vunpack.c.l.b16 %v1022
  %v1236 = vunpack.c.h.b16 %v1022
  %v1237 = vunpack.c.l.b16 %v1023
  %v1238 = vunpack.c.h.b16 %v1023
  %v1239 = vunpack.c.l.b16 %v1024
  %v1240 = vunpack.c.h.b16 %v1024
  %v1241 = vunpack.c.l.b16 %v1025
  %v1242 = vunpack.c.h.b16 %v1025
  %v1243 = vunpack.c.l.b16 %v1026
  %v1244 = vunpack.c.h.b16 %v1026
  %v1245 = vunpack.c.l.b16 %v1027
  %v1246 = vunpack.c.h.b16 %v1027
  %v1247 = vunpack.c.l.b16 %v1028
  %v1248 = vunpack.c.h.b16 %v1028
  %v1249 = vunpack.c.l.b16 %v1029
  %v1250 = vunpack.c.h.b16 %v1029
  %v1251 = vunpack.c.l.b16 %v1030
  %v1252 = vunpack.c.h.b16 %v1030
  %v1253 = vunpack.c.l.b16 %v1031
  %v1254 = vunpack.c.h.b16 %v1031
  %v1255 = vunpack.c.l.b16 %v1032
  %v1256 = vunpack.c.h.b16 %v1032
  %v1257 = vunpack.c.l.b16 %v1033
  %v1258 = vunpack.c.h.b16 %v1033
  %v1259 = vunpack.c.l.b16 %v1034
  %v1260 = vunpack.c.h.b16 %v1034
  %v1261 = vunpack.c.l.b16 %v1035
  %v1262 = vunpack.c.h.b16 %v1035
  %v1263 = vunpack.c.l.b16 %v1036
  %v1264 = vunpack.c.h.b16 %v1036
  %v1265 = vunpack.c.l.b16 %v1037
  %v1266 = vunpack.c.h.b16 %v1037
  %v1267 = vunpack.c.l.b16 %v1038
  %v1268 = vunpack.c.h.b16 %v1038
  %v1269 = vunpack.c.l.b16 %v1039
  %v1270 = vunpack.c.h.b16 %v1039
  %v1271 = vunpack.c.l.b16 %v1040
  %v1272 = vunpack.c.h.b16 %v1040
  %v1273 = vunpack.c.l.b16 %v1041
  %v1274 = vunpack.c.h.b16 %v1041
  %v1275 = vunpack.c.l.b16 %v1042
  %v1276 = vunpack.c.h.b16 %v1042
  %v1277 = vunpack.c.l.b16 %v1043
  %v1278 = vunpack.c.h.b16 %v1043
  %v1279 = vunpack.c.l.b16 %v1044
  %v1280 = vunpack.c.h.b16 %v1044
  %v1281 = vunpack.c.l.b16 %v1045
  %v1282 = vunpack.c.h.b16 %v1045
  %v1283 = vunpack.c.l.b16 %v1046
  %v1284 = vunpack.c.h.b16 %v1046
  %v1285 = vunpack.c.l.b16 %v1047
  %v1286 = vunpack.c.h.b16 %v1047
  %v1287 = vunpack.c.l.b16 %v1048
  %v1288 = vunpack.c.h.b16 %v1048
  %v1289 = vunpack.c.l.b16 %v1049
  %v1290 = vunpack.c.h.b16 %v1049
  %v1291 = vunpack.c.l.b16 %v1050
  %v1292 = vunpack.c.h.b16 %v1050
  %v1293 = vunpack.c.l.b16 %v1051
  %v1294 = vunpack.c.h.b16 %v1051
  %v1295 = vunpack.c.l.b16 %v1052
  %v1296 = vunpack.c.h.b16 %v1052
  %v1297 = vunpack.c.l.b16 %v1053
  %v1298 = vunpack.c.h.b16 %v1053
  %v1299 = vunpack.c.l.b16 %v1054
  %v1300 = vunpack.c.h.b16 %v1054
  %v1301 = vunpack.c.l.b16 %v1055
  %v1302 = vunpack.c.h.b16 %v1055
  %v1303 = vunpack.c.l.b16 %v1056
  %v1304 = vunpack.c.h.b16 %v1056
  %v1305 = vunpack.c.l.b16 %v1057
  %v1306 = vunpack.c.h.b16 %v1057
  %v1307 = vunpack.c.l.b16 %v1058
  %v1308 = vunpack.c.h.b16 %v1058
  %v1309 = vunpack.c.l.b16 %v1059
  %v1310 = vunpack.c.h.b16 %v1059
  %v1311 = vunpack.c.l.b16 %v1060
  %v1312 = vunpack.c.h.b16 %v1060
  %v1313 = vunpack.c.l.b16 %v1061
  %v1314 = vunpack.c.h.b16 %v1061
  %v1315 = vunpack.c.l.b16 %v1062
  %v1316 = vunpack.c.h.b16 %v1062
  %v1317 = vunpack.c.l.b16 %v1063
  %v1318 = vunpack.c.h.b16 %v1063
  %v1319 = vunpack.c.l.b16 %v1064
  %v1320 = vunpack.c.h.b16 %v1064
  %v1321 = vunpack.c.l.b16 %v1065
  %v1322 = vunpack.c.h.b16 %v1065
  %v1323 = vunpack.c.l.b16 %v1066
  %v1324 = vunpack.c.h.b16 %v1066
  %v1325 = vunpack.c.l.b16 %v1067
  %v1326 = vunpack.c.h.b16 %v1067
  %v1327 = vunpack.c.l.b16 %v1068
  %v1328 = vunpack.c.h.b16 %v1068
  %v1329 = vunpack.c.l.b16 %v1069
  %v1330 = vunpack.c.h.b16 %v1069
  %v1331 = vunpack.c.l.b16 %v1070
  %v1332 = vunpack.c.h.b16 %v1070
  %v1333 = vunpack.c.l.b16 %v1071
  %v1334 = vunpack.c.h.b16 %v1071
  %v1335 = vunpack.c.l.b16 %v1072
  %v1336 = vunpack.c.h.b16 %v1072
  %v1337 = vunpack.c.l.b16 %v1073
  %v1338 = vunpack.c.h.b16 %v1073
  %v1339 = vunpack.c.l.b16 %v1074
  %v1340 = vunpack.c.h.b16 %v1074
  %v1341 = vunpack.c.l.b16 %v1075
  %v1342 = vunpack.c.h.b16 %v1075
  %v1343 = vunpack.c.l.b16 %v1076
  %v1344 = vunpack.c.h.b16 %v1076
  %v1345 = vunpack.c.l.b16 %v1077
  %v1346 = vunpack.c.h.b16 %v1077
  %v1347 = vunpack.c.l.b16 %v1078
  %v1348 = vunpack.c.h.b16 %v1078
  %v1349 = vunpack.c.l.b16 %v1079
  %v1350 = vunpack.c.h.b16 %v1079
  %v1351 = vunpack.c.l.b16 %v1080
  %v1352 = vunpack.c.h.b16 %v1080
  %v1353 = vunpack.c.l.b16 %v1081
  %v1354 = vunpack.c.h.b16 %v1081
  %v1355 = vunpack.c.l.b16 %v1082
  %v1356 = vunpack.c.h.b16 %v1082
  %v1357 = vunpack.c.l.b16 %v1083
  %v1358 = vunpack.c.h.b16 %v1083
  %v1359 = vunpack.c.l.b16 %v1084
  %v1360 = vunpack.c.h.b16 %v1084
  %v1361 = vunpack.c.l.b16 %v1085
  %v1362 = vunpack.c.h.b16 %v1085
  %v1363 = vunpack.c.l.b16 %v1086
  %v1364 = vunpack.c.h.b16 %v1086
  %v1365 = vunpack.c.l.b16 %v1087
  %v1366 = vunpack.c.h.b16 %v1087
  %v1367 = vunpack.c.l.b16 %v1088
  %v1368 = vunpack.c.h.b16 %v1088
  %v1369 = vunpack.c.l.b16 %v1089
  %v1370 = vunpack.c.h.b16 %v1089
  %v1371 = vunpack.c.l.b16 %v1090
  %v1372 = vunpack.c.h.b16 %v1090
  %v1373 = vunpack.c.l.b16 %v1091
  %v1374 = vunpack.c.h.b16 %v1091
  %v1375 = vunpack.c.l.b16 %v1092
  %v1376 = vunpack.c.h.b16 %v1092
  %v1377 = vunpack.c.l.b16 %v1093
  %v1378 = vunpack.c.h.b16 %v1093
  %v1379 = vunpack.c.l.b16 %v1094
  %v1380 = vunpack.c.h.b16 %v1094
  %v1381 = vunpack.c.l.b16 %v1095
  %v1382 = vunpack.c.h.b16 %v1095
  %v1383 = vunpack.c.l.b16 %v1096
  %v1384 = vunpack.c.h.b16 %v1096
  %v1385 = vunpack.c.l.b16 %v1097
  %v1386 = vunpack.c.h.b16 %v1097
  %v1387 = vunpack.c.l.b16 %v1098
  %v1388 = vunpack.c.h.b16 %v1098
  %v1389 = vunpack.c.l.b16 %v1099
  %v1390 = vunpack.c.h.b16 %v1099
  %v1391 = vunpack.c.l.b16 %v1100
  %v1392 = vunpack.c.h.b16 %v1100
  %v1393 = vunpack.c.l.b16 %v1101
  %v1394 = vunpack.c.h.b16 %v1101
  %v1395 = vunpack.c.l.b16 %v1102
  %v1396 = vunpack.c.h.b16 %v1102
  %v1397 = vunpack.c.l.b16 %v1103
  %v1398 = vunpack.c.h.b16 %v1103
  %v1399 = vunpack.c.l.b16 %v1104
  %v1400 = vunpack.c.h.b16 %v1104
  %v1401 = vunpack.c.l.b16 %v1105
  %v1402 = vunpack.c.h.b16 %v1105
  %v1403 = vunpack.c.l.b16 %v1106
  %v1404 = vunpack.c.h.b16 %v1106
  %v1405 = vunpack.c.l.b16 %v1107
  %v1406 = vunpack.c.h.b16 %v1107
  %v1407 = vunpack.c.l.b16 %v1108
  %v1408 = vunpack.c.h.b16 %v1108
  %v1409 = vpack.c.b16 %v1219, %v1209
  %v1410 = vpack.c.b16 %v1220, %v1210
  %v1411 = vpack.c.b16 %v1221, %v1211
  %v1412 = vpack.c.b16 %v1222, %v1212
  %v1413 = vpack.c.b16 %v1223, %v1213
  %v1414 = vpack.c.b16 %v1224, %v1214
  %v1415 = vpack.c.b16 %v1225, %v1215
  %v1416 = vpack.c.b16 %v1226, %v1216
  %v1417 = vpack.c.b16 %v1227, %v1217
  %v1418 = vpack.c.b16 %v1228, %v1218
  %v1419 = vpack.c.b16 %v1239, %v1229
  %v1420 = vpack.c.b16 %v1240, %v1230
  %v1421 = vpack.c.b16 %v1241, %v1231
  %v1422 = vpack.c.b16 %v1242, %v1232
  %v1423 = vpack.c.b16 %v1243, %v1233
  %v1424 = vpack.c.b16 %v1244, %v1234
  %v1425 = vpack.c.b16 %v1245, %v1235
  %v1426 = vpack.c.b16 %v1246, %v1236
  %v1427 = vpack.c.b16 %v1247, %v1237
  %v1428 = vpack.c.b16 %v1248, %v1238
  %v1429 = vpack.c.b16 %v1259, %v1249
  %v1430 = vpack.c.b16 %v1260, %v1250
  %v1431 = vpack.c.b16 %v1261, %v1251
  %v1432 = vpack.c.b16 %v1262, %v1252
  %v1433 = vpack.c.b16 %v1263, %v1253
  %v1434 = vpack.c.b16 %v1264, %v1254
  %v1435 = vpack.c.b16 %v1265, %v1255
  %v1436 = vpack.c.b16 %v1266, %v1256
  %v1437 = vpack.c.b16 %v1267, %v1257
  %v1438 = vpack.c.b16 %v1268, %v1258
  %v1439 = vpack.c.b16 %v1279, %v1269
  %v1440 = vpack.c.b16 %v1280, %v1270
  %v1441 = vpack.c.b16 %v1281, %v1271
  %v1442 = vpack.c.b16 %v1282, %v1272
  %v1443 = vpack.c.b16 %v1283, %v1273
  %v1444 = vpack.c.b16 %v1284, %v1274
  %v1445 = vpack.c.b16 %v1285, %v1275
  %v1446 = vpack.c.b16 %v1286, %v1276
  %v1447 = vpack.c.b16 %v1287, %v1277
  %v1448 = vpack.c.b16 %v1288, %v1278
  %v1449 = vpack.c.b16 %v1299, %v1289
  %v1450 = vpack.c.b16 %v1300, %v1290
  %v1451 = vpack.c.b16 %v1301, %v1291
  %v1452 = vpack.c.b16 %v1302, %v1292
  %v1453 = vpack.c.b16 %v1303, %v1293
  %v1454 = vpack.c.b16 %v1304, %v1294
  %v1455 = vpack.c.b16 %v1305, %v1295
  %v1456 = vpack.c.b16 %v1306, %v1296
  %v1457 = vpack.c.b16 %v1307, %v1297
  %v1458 = vpack.c.b16 %v1308, %v1298
  %v1459 = vpack.c.b16 %v1319, %v1309
  %v1460 = vpack.c.b16 %v1320, %v1310
  %v1461 = vpack.c.b16 %v1321, %v1311
  %v1462 = vpack.c.b16 %v1322, %v1312
  %v1463 = vpack.c.b16 %v1323, %v1313
  %v1464 = vpack.c.b16 %v1324, %v1314
  %v1465 = vpack.c.b16 %v1325, %v1315
  %v1466 = vpack.c.b16 %v1326, %v1316
  %v1467 = vpack.c.b16 %v1327, %v1317
  %v1468 = vpack.c.b16 %v1328, %v1318
  %v1469 = vpack.c.b16 %v1339, %v1329
  %v1470 = vpack.c.b16 %v1340, %v1330
  %v1471 = vpack.c.b16 %v1341, %v1331
  %v1472 = vpack.c.b16 %v1342, %v1332
  %v1473 = vpack.c.b16 %v1343, %v1333
  %v1474 = vpack.c.b16 %v1344, %v1334
  %v1475 = vpack.c.b16 %v1345, %v1335
  %v1476 = vpack.c.b16 %v1346, %v1336
  %v1477 = vpack.c.b16 %v1347, %v1337
  %v1478 = vpack.c.b16 %v1348, %v1338
  %v1479 = vpack.c.b16 %v1359, %v1349
  %v1480 = vpack.c.b16 %v1360, %v1350
  %v1481 = vpack.c.b16 %v1361, %v1351
  %v1482 = vpack.c.b16 %v1362, %v1352
  %v1483 = vpack.c.b16 %v1363, %v1353
  %v1484 = vpack.c.b16 %v1364, %v1354
  %v1485 = vpack.c.b16 %v1365, %v1355
  %v1486 = vpack.c.b16 %v1366, %v1356
  %v1487 = vpack.c.b16 %v1367, %v1357
  %v1488 = vpack.c.b16 %v1368, %v1358
  %v1489 = vpack.c.b16 %v1379, %v1369
  %v1490 = vpack.c.b16 %v1380, %v1370
  %v1491 = vpack.c.b16 %v1381, %v1371
  %v1492 = vpack.c.b16 %v1382, %v1372
  %v1493 = vpack.c.b16 %v1383, %v1373
  %v1494 = vpack.c.b16 %v1384, %v1374
  %v1495 = vpack.c.b16 %v1385, %v1375
  %v1496 = vpack.c.b16 %v1386, %v1376
  %v1497 = vpack.c.b16 %v1387, %v1377
  %v1498 = vpack.c.b16 %v1388, %v1378
  %v1499 = vpack.c.b16 %v1399, %v1389
  %v1500 = vpack.c.b16 %v1400, %v1390
  %v1501 = vpack.c.b16 %v1401, %v1391
  %v1502 = vpack.c.b16 %v1402, %v1392
  %v1503 = vpack.c.b16 %v1403, %v1393
  %v1504 = vpack.c.b16 %v1404, %v1394
  %v1505 = vpack.c.b16 %v1405, %v1395
  %v1506 = vpack.c.b16 %v1406, %v1396
  %v1507 = vpack.c.b16 %v1407, %v1397
  %v1508 = vpack.c.b16 %v1408, %v1398
  %v1610 = vsel %vm847, %v1002, 0
  %v1613 = vsel %vm847, %v1004, 0
  %v1616 = vsel %vm847, %v1006, 0
  %v1619 = vsel %vm847, %v1008, 0
  %1621 = vmatpush.bf16.msra.mxu0 %v1479
  %1622 = vmatpush.bf16.msra.mxu0 %v1469
  %1623 = vmatpush.bf16.msra.mxu0 %v1459
  %1624 = vmatpush.bf16.msra.mxu0 %v1449
  %1625 = vmatpush.bf16.msra.mxu0 %v1439
  %1626 = vmatpush.bf16.msra.mxu0 %v1429
  %1627 = vmatpush.bf16.msra.mxu0 %v1419
  %1628 = vmatpush.bf16.msra.mxu0 %v1409
  %1629 = vmatmul.bf16.gmra.mxu0 %v1001
  %v1630 = vpop.f32.mrf.mxu0
  %v1631 = vadd.f32 0.0, %v1630
  %v1632 = vpop.f32.mrf.mxu0
  %v1633 = vadd.f32 0.0, %v1632
  %1634 = vmatmul.bf16.gmra.mxu0 %v1003
  %v1635 = vpop.f32.mrf.mxu0
  %v1636 = vadd.f32 0.0, %v1635
  %v1637 = vpop.f32.mrf.mxu0
  %v1638 = vadd.f32 0.0, %v1637
  %1639 = vmatmul.bf16.gmra.mxu0 %v1005
  %v1640 = vpop.f32.mrf.mxu0
  %v1641 = vadd.f32 0.0, %v1640
  %v1642 = vpop.f32.mrf.mxu0
  %v1643 = vadd.f32 0.0, %v1642
  %1644 = vmatmul.bf16.gmra.mxu0 %v1007
  %v1645 = vpop.f32.mrf.mxu0
  %v1646 = vadd.f32 0.0, %v1645
  %v1647 = vpop.f32.mrf.mxu0
  %1648 = vdwg.mxu0
  %1649 = vmatpush.bf16.msra.mxu0 0
  %1650 = vmatpush.bf16.msra.mxu0 0
  %1651 = vmatpush.bf16.msra.mxu0 0
  %1652 = vmatpush.bf16.msra.mxu0 0
  %1653 = vmatpush.bf16.msra.mxu0 0
  %1654 = vmatpush.bf16.msra.mxu0 0
  %1655 = vmatpush.bf16.msra.mxu0 %v1499
  %1656 = vmatpush.bf16.msra.mxu0 %v1489
  %1657 = vmatmul.bf16.gmra.mxu0 %v1610
  %v1658 = vpop.f32.mrf.mxu0
  %v1659 = vadd.f32 %v1631, %v1658
  %v1660 = vpop.f32.mrf.mxu0
  %v1661 = vadd.f32 %v1633, %v1660
  %1662 = vmatmul.bf16.gmra.mxu0 %v1613
  %v1663 = vpop.f32.mrf.mxu0
  %v1664 = vadd.f32 %v1636, %v1663
  %v1665 = vpop.f32.mrf.mxu0
  %v1666 = vadd.f32 %v1638, %v1665
  %1667 = vmatmul.bf16.gmra.mxu0 %v1616
  %v1668 = vpop.f32.mrf.mxu0
  %v1669 = vadd.f32 %v1641, %v1668
  %v1670 = vpop.f32.mrf.mxu0
  %v1671 = vadd.f32 %v1643, %v1670
  %1672 = vmatmul.bf16.gmra.mxu0 %v1619
  %v1673 = vpop.f32.mrf.mxu0
  %v1674 = vadd.f32 %v1646, %v1673
  %v1675 = vpop.f32.mrf.mxu0
  %1676 = vdwg.mxu0
  %1677 = vmatpush.bf16.msra.mxu0 %v1480
  %1678 = vmatpush.bf16.msra.mxu0 %v1470
  %1679 = vmatpush.bf16.msra.mxu0 %v1460
  %1680 = vmatpush.bf16.msra.mxu0 %v1450
  %1681 = vmatpush.bf16.msra.mxu0 %v1440
  %1682 = vmatpush.bf16.msra.mxu0 %v1430
  %1683 = vmatpush.bf16.msra.mxu0 %v1420
  %1684 = vmatpush.bf16.msra.mxu0 %v1410
  %1685 = vmatmul.bf16.gmra.mxu0 %v1001
  %v1686 = vpop.f32.mrf.mxu0
  %v1687 = vadd.f32 0.0, %v1686
  %v1688 = vpop.f32.mrf.mxu0
  %v1689 = vadd.f32 0.0, %v1688
  %1690 = vmatmul.bf16.gmra.mxu0 %v1003
  %v1691 = vpop.f32.mrf.mxu0
  %v1692 = vadd.f32 0.0, %v1691
  %v1693 = vpop.f32.mrf.mxu0
  %v1694 = vadd.f32 0.0, %v1693
  %1695 = vmatmul.bf16.gmra.mxu0 %v1005
  %v1696 = vpop.f32.mrf.mxu0
  %v1697 = vadd.f32 0.0, %v1696
  %v1698 = vpop.f32.mrf.mxu0
  %v1699 = vadd.f32 0.0, %v1698
  %1700 = vmatmul.bf16.gmra.mxu0 %v1007
  %v1701 = vpop.f32.mrf.mxu0
  %v1702 = vadd.f32 0.0, %v1701
  %v1703 = vpop.f32.mrf.mxu0
  %1704 = vdwg.mxu0
  %1705 = vmatpush.bf16.msra.mxu0 0
  %1706 = vmatpush.bf16.msra.mxu0 0
  %1707 = vmatpush.bf16.msra.mxu0 0
  %1708 = vmatpush.bf16.msra.mxu0 0
  %1709 = vmatpush.bf16.msra.mxu0 0
  %1710 = vmatpush.bf16.msra.mxu0 0
  %1711 = vmatpush.bf16.msra.mxu0 %v1500
  %1712 = vmatpush.bf16.msra.mxu0 %v1490
  %1713 = vmatmul.bf16.gmra.mxu0 %v1610
  %v1714 = vpop.f32.mrf.mxu0
  %v1715 = vadd.f32 %v1687, %v1714
  %v1716 = vpop.f32.mrf.mxu0
  %v1717 = vadd.f32 %v1689, %v1716
  %1718 = vmatmul.bf16.gmra.mxu0 %v1613
  %v1719 = vpop.f32.mrf.mxu0
  %v1720 = vadd.f32 %v1692, %v1719
  %v1721 = vpop.f32.mrf.mxu0
  %v1722 = vadd.f32 %v1694, %v1721
  %1723 = vmatmul.bf16.gmra.mxu0 %v1616
  %v1724 = vpop.f32.mrf.mxu0
  %v1725 = vadd.f32 %v1697, %v1724
  %v1726 = vpop.f32.mrf.mxu0
  %v1727 = vadd.f32 %v1699, %v1726
  %1728 = vmatmul.bf16.gmra.mxu0 %v1619
  %v1729 = vpop.f32.mrf.mxu0
  %v1730 = vadd.f32 %v1702, %v1729
  %v1731 = vpop.f32.mrf.mxu0
  %1732 = vdwg.mxu0
  %1733 = vmatpush.bf16.msra.mxu0 %v1481
  %1734 = vmatpush.bf16.msra.mxu0 %v1471
  %1735 = vmatpush.bf16.msra.mxu0 %v1461
  %1736 = vmatpush.bf16.msra.mxu0 %v1451
  %1737 = vmatpush.bf16.msra.mxu0 %v1441
  %1738 = vmatpush.bf16.msra.mxu0 %v1431
  %1739 = vmatpush.bf16.msra.mxu0 %v1421
  %1740 = vmatpush.bf16.msra.mxu0 %v1411
  %1741 = vmatmul.bf16.gmra.mxu0 %v1001
  %v1742 = vpop.f32.mrf.mxu0
  %v1743 = vadd.f32 0.0, %v1742
  %v1744 = vpop.f32.mrf.mxu0
  %v1745 = vadd.f32 0.0, %v1744
  %1746 = vmatmul.bf16.gmra.mxu0 %v1003
  %v1747 = vpop.f32.mrf.mxu0
  %v1748 = vadd.f32 0.0, %v1747
  %v1749 = vpop.f32.mrf.mxu0
  %v1750 = vadd.f32 0.0, %v1749
  %1751 = vmatmul.bf16.gmra.mxu0 %v1005
  %v1752 = vpop.f32.mrf.mxu0
  %v1753 = vadd.f32 0.0, %v1752
  %v1754 = vpop.f32.mrf.mxu0
  %v1755 = vadd.f32 0.0, %v1754
  %1756 = vmatmul.bf16.gmra.mxu0 %v1007
  %v1757 = vpop.f32.mrf.mxu0
  %v1758 = vadd.f32 0.0, %v1757
  %v1759 = vpop.f32.mrf.mxu0
  %1760 = vdwg.mxu0
  %1761 = vmatpush.bf16.msra.mxu0 0
  %1762 = vmatpush.bf16.msra.mxu0 0
  %1763 = vmatpush.bf16.msra.mxu0 0
  %1764 = vmatpush.bf16.msra.mxu0 0
  %1765 = vmatpush.bf16.msra.mxu0 0
  %1766 = vmatpush.bf16.msra.mxu0 0
  %1767 = vmatpush.bf16.msra.mxu0 %v1501
  %1768 = vmatpush.bf16.msra.mxu0 %v1491
  %1769 = vmatmul.bf16.gmra.mxu0 %v1610
  %v1770 = vpop.f32.mrf.mxu0
  %v1771 = vadd.f32 %v1743, %v1770
  %v1772 = vpop.f32.mrf.mxu0
  %v1773 = vadd.f32 %v1745, %v1772
  %1774 = vmatmul.bf16.gmra.mxu0 %v1613
  %v1775 = vpop.f32.mrf.mxu0
  %v1776 = vadd.f32 %v1748, %v1775
  %v1777 = vpop.f32.mrf.mxu0
  %v1778 = vadd.f32 %v1750, %v1777
  %1779 = vmatmul.bf16.gmra.mxu0 %v1616
  %v1780 = vpop.f32.mrf.mxu0
  %v1781 = vadd.f32 %v1753, %v1780
  %v1782 = vpop.f32.mrf.mxu0
  %v1783 = vadd.f32 %v1755, %v1782
  %1784 = vmatmul.bf16.gmra.mxu0 %v1619
  %v1785 = vpop.f32.mrf.mxu0
  %v1786 = vadd.f32 %v1758, %v1785
  %v1787 = vpop.f32.mrf.mxu0
  %1788 = vdwg.mxu0
  %1789 = vmatpush.bf16.msra.mxu0 %v1482
  %1790 = vmatpush.bf16.msra.mxu0 %v1472
  %1791 = vmatpush.bf16.msra.mxu0 %v1462
  %1792 = vmatpush.bf16.msra.mxu0 %v1452
  %1793 = vmatpush.bf16.msra.mxu0 %v1442
  %1794 = vmatpush.bf16.msra.mxu0 %v1432
  %1795 = vmatpush.bf16.msra.mxu0 %v1422
  %1796 = vmatpush.bf16.msra.mxu0 %v1412
  %1797 = vmatmul.bf16.gmra.mxu0 %v1001
  %v1798 = vpop.f32.mrf.mxu0
  %v1799 = vadd.f32 0.0, %v1798
  %v1800 = vpop.f32.mrf.mxu0
  %v1801 = vadd.f32 0.0, %v1800
  %1802 = vmatmul.bf16.gmra.mxu0 %v1003
  %v1803 = vpop.f32.mrf.mxu0
  %v1804 = vadd.f32 0.0, %v1803
  %v1805 = vpop.f32.mrf.mxu0
  %v1806 = vadd.f32 0.0, %v1805
  %1807 = vmatmul.bf16.gmra.mxu0 %v1005
  %v1808 = vpop.f32.mrf.mxu0
  %v1809 = vadd.f32 0.0, %v1808
  %v1810 = vpop.f32.mrf.mxu0
  %v1811 = vadd.f32 0.0, %v1810
  %1812 = vmatmul.bf16.gmra.mxu0 %v1007
  %v1813 = vpop.f32.mrf.mxu0
  %v1814 = vadd.f32 0.0, %v1813
  %v1815 = vpop.f32.mrf.mxu0
  %1816 = vdwg.mxu0
  %1817 = vmatpush.bf16.msra.mxu0 0
  %1818 = vmatpush.bf16.msra.mxu0 0
  %1819 = vmatpush.bf16.msra.mxu0 0
  %1820 = vmatpush.bf16.msra.mxu0 0
  %1821 = vmatpush.bf16.msra.mxu0 0
  %1822 = vmatpush.bf16.msra.mxu0 0
  %1823 = vmatpush.bf16.msra.mxu0 %v1502
  %1824 = vmatpush.bf16.msra.mxu0 %v1492
  %1825 = vmatmul.bf16.gmra.mxu0 %v1610
  %v1826 = vpop.f32.mrf.mxu0
  %v1827 = vadd.f32 %v1799, %v1826
  %v1828 = vpop.f32.mrf.mxu0
  %v1829 = vadd.f32 %v1801, %v1828
  %1830 = vmatmul.bf16.gmra.mxu0 %v1613
  %v1831 = vpop.f32.mrf.mxu0
  %v1832 = vadd.f32 %v1804, %v1831
  %v1833 = vpop.f32.mrf.mxu0
  %v1834 = vadd.f32 %v1806, %v1833
  %1835 = vmatmul.bf16.gmra.mxu0 %v1616
  %v1836 = vpop.f32.mrf.mxu0
  %v1837 = vadd.f32 %v1809, %v1836
  %v1838 = vpop.f32.mrf.mxu0
  %v1839 = vadd.f32 %v1811, %v1838
  %1840 = vmatmul.bf16.gmra.mxu0 %v1619
  %v1841 = vpop.f32.mrf.mxu0
  %v1842 = vadd.f32 %v1814, %v1841
  %v1843 = vpop.f32.mrf.mxu0
  %1844 = vdwg.mxu0
  %1845 = vmatpush.bf16.msra.mxu0 %v1483
  %1846 = vmatpush.bf16.msra.mxu0 %v1473
  %1847 = vmatpush.bf16.msra.mxu0 %v1463
  %1848 = vmatpush.bf16.msra.mxu0 %v1453
  %1849 = vmatpush.bf16.msra.mxu0 %v1443
  %1850 = vmatpush.bf16.msra.mxu0 %v1433
  %1851 = vmatpush.bf16.msra.mxu0 %v1423
  %1852 = vmatpush.bf16.msra.mxu0 %v1413
  %1853 = vmatmul.bf16.gmra.mxu0 %v1001
  %v1854 = vpop.f32.mrf.mxu0
  %v1855 = vadd.f32 0.0, %v1854
  %v1856 = vpop.f32.mrf.mxu0
  %v1857 = vadd.f32 0.0, %v1856
  %1858 = vmatmul.bf16.gmra.mxu0 %v1003
  %v1859 = vpop.f32.mrf.mxu0
  %v1860 = vadd.f32 0.0, %v1859
  %v1861 = vpop.f32.mrf.mxu0
  %v1862 = vadd.f32 0.0, %v1861
  %1863 = vmatmul.bf16.gmra.mxu0 %v1005
  %v1864 = vpop.f32.mrf.mxu0
  %v1865 = vadd.f32 0.0, %v1864
  %v1866 = vpop.f32.mrf.mxu0
  %v1867 = vadd.f32 0.0, %v1866
  %1868 = vmatmul.bf16.gmra.mxu0 %v1007
  %v1869 = vpop.f32.mrf.mxu0
  %v1870 = vadd.f32 0.0, %v1869
  %v1871 = vpop.f32.mrf.mxu0
  %1872 = vdwg.mxu0
  %1873 = vmatpush.bf16.msra.mxu0 0
  %1874 = vmatpush.bf16.msra.mxu0 0
  %1875 = vmatpush.bf16.msra.mxu0 0
  %1876 = vmatpush.bf16.msra.mxu0 0
  %1877 = vmatpush.bf16.msra.mxu0 0
  %1878 = vmatpush.bf16.msra.mxu0 0
  %1879 = vmatpush.bf16.msra.mxu0 %v1503
  %1880 = vmatpush.bf16.msra.mxu0 %v1493
  %1881 = vmatmul.bf16.gmra.mxu0 %v1610
  %v1882 = vpop.f32.mrf.mxu0
  %v1883 = vadd.f32 %v1855, %v1882
  %v1884 = vpop.f32.mrf.mxu0
  %v1885 = vadd.f32 %v1857, %v1884
  %1886 = vmatmul.bf16.gmra.mxu0 %v1613
  %v1887 = vpop.f32.mrf.mxu0
  %v1888 = vadd.f32 %v1860, %v1887
  %v1889 = vpop.f32.mrf.mxu0
  %v1890 = vadd.f32 %v1862, %v1889
  %1891 = vmatmul.bf16.gmra.mxu0 %v1616
  %v1892 = vpop.f32.mrf.mxu0
  %v1893 = vadd.f32 %v1865, %v1892
  %v1894 = vpop.f32.mrf.mxu0
  %v1895 = vadd.f32 %v1867, %v1894
  %1896 = vmatmul.bf16.gmra.mxu0 %v1619
  %v1897 = vpop.f32.mrf.mxu0
  %v1898 = vadd.f32 %v1870, %v1897
  %v1899 = vpop.f32.mrf.mxu0
  %1900 = vdwg.mxu0
  %1901 = vmatpush.bf16.msra.mxu0 %v1484
  %1902 = vmatpush.bf16.msra.mxu0 %v1474
  %1903 = vmatpush.bf16.msra.mxu0 %v1464
  %1904 = vmatpush.bf16.msra.mxu0 %v1454
  %1905 = vmatpush.bf16.msra.mxu0 %v1444
  %1906 = vmatpush.bf16.msra.mxu0 %v1434
  %1907 = vmatpush.bf16.msra.mxu0 %v1424
  %1908 = vmatpush.bf16.msra.mxu0 %v1414
  %1909 = vmatmul.bf16.gmra.mxu0 %v1001
  %v1910 = vpop.f32.mrf.mxu0
  %v1911 = vadd.f32 0.0, %v1910
  %v1912 = vpop.f32.mrf.mxu0
  %v1913 = vadd.f32 0.0, %v1912
  %1914 = vmatmul.bf16.gmra.mxu0 %v1003
  %v1915 = vpop.f32.mrf.mxu0
  %v1916 = vadd.f32 0.0, %v1915
  %v1917 = vpop.f32.mrf.mxu0
  %v1918 = vadd.f32 0.0, %v1917
  %1919 = vmatmul.bf16.gmra.mxu0 %v1005
  %v1920 = vpop.f32.mrf.mxu0
  %v1921 = vadd.f32 0.0, %v1920
  %v1922 = vpop.f32.mrf.mxu0
  %v1923 = vadd.f32 0.0, %v1922
  %1924 = vmatmul.bf16.gmra.mxu0 %v1007
  %v1925 = vpop.f32.mrf.mxu0
  %v1926 = vadd.f32 0.0, %v1925
  %v1927 = vpop.f32.mrf.mxu0
  %1928 = vdwg.mxu0
  %1929 = vmatpush.bf16.msra.mxu0 0
  %1930 = vmatpush.bf16.msra.mxu0 0
  %1931 = vmatpush.bf16.msra.mxu0 0
  %1932 = vmatpush.bf16.msra.mxu0 0
  %1933 = vmatpush.bf16.msra.mxu0 0
  %1934 = vmatpush.bf16.msra.mxu0 0
  %1935 = vmatpush.bf16.msra.mxu0 %v1504
  %1936 = vmatpush.bf16.msra.mxu0 %v1494
  %1937 = vmatmul.bf16.gmra.mxu0 %v1610
  %v1938 = vpop.f32.mrf.mxu0
  %v1939 = vadd.f32 %v1911, %v1938
  %v1940 = vpop.f32.mrf.mxu0
  %v1941 = vadd.f32 %v1913, %v1940
  %1942 = vmatmul.bf16.gmra.mxu0 %v1613
  %v1943 = vpop.f32.mrf.mxu0
  %v1944 = vadd.f32 %v1916, %v1943
  %v1945 = vpop.f32.mrf.mxu0
  %v1946 = vadd.f32 %v1918, %v1945
  %1947 = vmatmul.bf16.gmra.mxu0 %v1616
  %v1948 = vpop.f32.mrf.mxu0
  %v1949 = vadd.f32 %v1921, %v1948
  %v1950 = vpop.f32.mrf.mxu0
  %v1951 = vadd.f32 %v1923, %v1950
  %1952 = vmatmul.bf16.gmra.mxu0 %v1619
  %v1953 = vpop.f32.mrf.mxu0
  %v1954 = vadd.f32 %v1926, %v1953
  %v1955 = vpop.f32.mrf.mxu0
  %1956 = vdwg.mxu0
  %1957 = vmatpush.bf16.msra.mxu0 %v1485
  %1958 = vmatpush.bf16.msra.mxu0 %v1475
  %1959 = vmatpush.bf16.msra.mxu0 %v1465
  %1960 = vmatpush.bf16.msra.mxu0 %v1455
  %1961 = vmatpush.bf16.msra.mxu0 %v1445
  %1962 = vmatpush.bf16.msra.mxu0 %v1435
  %1963 = vmatpush.bf16.msra.mxu0 %v1425
  %1964 = vmatpush.bf16.msra.mxu0 %v1415
  %1965 = vmatmul.bf16.gmra.mxu0 %v1001
  %v1966 = vpop.f32.mrf.mxu0
  %v1967 = vadd.f32 0.0, %v1966
  %v1968 = vpop.f32.mrf.mxu0
  %v1969 = vadd.f32 0.0, %v1968
  %1970 = vmatmul.bf16.gmra.mxu0 %v1003
  %v1971 = vpop.f32.mrf.mxu0
  %v1972 = vadd.f32 0.0, %v1971
  %v1973 = vpop.f32.mrf.mxu0
  %v1974 = vadd.f32 0.0, %v1973
  %1975 = vmatmul.bf16.gmra.mxu0 %v1005
  %v1976 = vpop.f32.mrf.mxu0
  %v1977 = vadd.f32 0.0, %v1976
  %v1978 = vpop.f32.mrf.mxu0
  %v1979 = vadd.f32 0.0, %v1978
  %1980 = vmatmul.bf16.gmra.mxu0 %v1007
  %v1981 = vpop.f32.mrf.mxu0
  %v1982 = vadd.f32 0.0, %v1981
  %v1983 = vpop.f32.mrf.mxu0
  %1984 = vdwg.mxu0
  %1985 = vmatpush.bf16.msra.mxu0 0
  %1986 = vmatpush.bf16.msra.mxu0 0
  %1987 = vmatpush.bf16.msra.mxu0 0
  %1988 = vmatpush.bf16.msra.mxu0 0
  %1989 = vmatpush.bf16.msra.mxu0 0
  %1990 = vmatpush.bf16.msra.mxu0 0
  %1991 = vmatpush.bf16.msra.mxu0 %v1505
  %1992 = vmatpush.bf16.msra.mxu0 %v1495
  %1993 = vmatmul.bf16.gmra.mxu0 %v1610
  %v1994 = vpop.f32.mrf.mxu0
  %v1995 = vadd.f32 %v1967, %v1994
  %v1996 = vpop.f32.mrf.mxu0
  %v1997 = vadd.f32 %v1969, %v1996
  %1998 = vmatmul.bf16.gmra.mxu0 %v1613
  %v1999 = vpop.f32.mrf.mxu0
  %v2000 = vadd.f32 %v1972, %v1999
  %v2001 = vpop.f32.mrf.mxu0
  %v2002 = vadd.f32 %v1974, %v2001
  %2003 = vmatmul.bf16.gmra.mxu0 %v1616
  %v2004 = vpop.f32.mrf.mxu0
  %v2005 = vadd.f32 %v1977, %v2004
  %v2006 = vpop.f32.mrf.mxu0
  %v2007 = vadd.f32 %v1979, %v2006
  %2008 = vmatmul.bf16.gmra.mxu0 %v1619
  %v2009 = vpop.f32.mrf.mxu0
  %v2010 = vadd.f32 %v1982, %v2009
  %v2011 = vpop.f32.mrf.mxu0
  %2012 = vdwg.mxu0
  %2013 = vmatpush.bf16.msra.mxu0 %v1486
  %2014 = vmatpush.bf16.msra.mxu0 %v1476
  %2015 = vmatpush.bf16.msra.mxu0 %v1466
  %2016 = vmatpush.bf16.msra.mxu0 %v1456
  %2017 = vmatpush.bf16.msra.mxu0 %v1446
  %2018 = vmatpush.bf16.msra.mxu0 %v1436
  %2019 = vmatpush.bf16.msra.mxu0 %v1426
  %2020 = vmatpush.bf16.msra.mxu0 %v1416
  %2021 = vmatmul.bf16.gmra.mxu0 %v1001
  %v2022 = vpop.f32.mrf.mxu0
  %v2023 = vadd.f32 0.0, %v2022
  %v2024 = vpop.f32.mrf.mxu0
  %v2025 = vadd.f32 0.0, %v2024
  %2026 = vmatmul.bf16.gmra.mxu0 %v1003
  %v2027 = vpop.f32.mrf.mxu0
  %v2028 = vadd.f32 0.0, %v2027
  %v2029 = vpop.f32.mrf.mxu0
  %v2030 = vadd.f32 0.0, %v2029
  %2031 = vmatmul.bf16.gmra.mxu0 %v1005
  %v2032 = vpop.f32.mrf.mxu0
  %v2033 = vadd.f32 0.0, %v2032
  %v2034 = vpop.f32.mrf.mxu0
  %v2035 = vadd.f32 0.0, %v2034
  %2036 = vmatmul.bf16.gmra.mxu0 %v1007
  %v2037 = vpop.f32.mrf.mxu0
  %v2038 = vadd.f32 0.0, %v2037
  %v2039 = vpop.f32.mrf.mxu0
  %2040 = vdwg.mxu0
  %2041 = vmatpush.bf16.msra.mxu0 0
  %2042 = vmatpush.bf16.msra.mxu0 0
  %2043 = vmatpush.bf16.msra.mxu0 0
  %2044 = vmatpush.bf16.msra.mxu0 0
  %2045 = vmatpush.bf16.msra.mxu0 0
  %2046 = vmatpush.bf16.msra.mxu0 0
  %2047 = vmatpush.bf16.msra.mxu0 %v1506
  %2048 = vmatpush.bf16.msra.mxu0 %v1496
  %2049 = vmatmul.bf16.gmra.mxu0 %v1610
  %v2050 = vpop.f32.mrf.mxu0
  %v2051 = vadd.f32 %v2023, %v2050
  %v2052 = vpop.f32.mrf.mxu0
  %v2053 = vadd.f32 %v2025, %v2052
  %2054 = vmatmul.bf16.gmra.mxu0 %v1613
  %v2055 = vpop.f32.mrf.mxu0
  %v2056 = vadd.f32 %v2028, %v2055
  %v2057 = vpop.f32.mrf.mxu0
  %v2058 = vadd.f32 %v2030, %v2057
  %2059 = vmatmul.bf16.gmra.mxu0 %v1616
  %v2060 = vpop.f32.mrf.mxu0
  %v2061 = vadd.f32 %v2033, %v2060
  %v2062 = vpop.f32.mrf.mxu0
  %v2063 = vadd.f32 %v2035, %v2062
  %2064 = vmatmul.bf16.gmra.mxu0 %v1619
  %v2065 = vpop.f32.mrf.mxu0
  %v2066 = vadd.f32 %v2038, %v2065
  %v2067 = vpop.f32.mrf.mxu0
  %2068 = vdwg.mxu0
  %2069 = vmatpush.bf16.msra.mxu0 %v1487
  %2070 = vmatpush.bf16.msra.mxu0 %v1477
  %2071 = vmatpush.bf16.msra.mxu0 %v1467
  %2072 = vmatpush.bf16.msra.mxu0 %v1457
  %2073 = vmatpush.bf16.msra.mxu0 %v1447
  %2074 = vmatpush.bf16.msra.mxu0 %v1437
  %2075 = vmatpush.bf16.msra.mxu0 %v1427
  %2076 = vmatpush.bf16.msra.mxu0 %v1417
  %2077 = vmatmul.bf16.gmra.mxu0 %v1001
  %v2078 = vpop.f32.mrf.mxu0
  %v2079 = vadd.f32 0.0, %v2078
  %v2080 = vpop.f32.mrf.mxu0
  %v2081 = vadd.f32 0.0, %v2080
  %2082 = vmatmul.bf16.gmra.mxu0 %v1003
  %v2083 = vpop.f32.mrf.mxu0
  %v2084 = vadd.f32 0.0, %v2083
  %v2085 = vpop.f32.mrf.mxu0
  %v2086 = vadd.f32 0.0, %v2085
  %2087 = vmatmul.bf16.gmra.mxu0 %v1005
  %v2088 = vpop.f32.mrf.mxu0
  %v2089 = vadd.f32 0.0, %v2088
  %v2090 = vpop.f32.mrf.mxu0
  %v2091 = vadd.f32 0.0, %v2090
  %2092 = vmatmul.bf16.gmra.mxu0 %v1007
  %v2093 = vpop.f32.mrf.mxu0
  %v2094 = vadd.f32 0.0, %v2093
  %v2095 = vpop.f32.mrf.mxu0
  %2096 = vdwg.mxu0
  %2097 = vmatpush.bf16.msra.mxu0 0
  %2098 = vmatpush.bf16.msra.mxu0 0
  %2099 = vmatpush.bf16.msra.mxu0 0
  %2100 = vmatpush.bf16.msra.mxu0 0
  %2101 = vmatpush.bf16.msra.mxu0 0
  %2102 = vmatpush.bf16.msra.mxu0 0
  %2103 = vmatpush.bf16.msra.mxu0 %v1507
  %2104 = vmatpush.bf16.msra.mxu0 %v1497
  %2105 = vmatmul.bf16.gmra.mxu0 %v1610
  %v2106 = vpop.f32.mrf.mxu0
  %v2107 = vadd.f32 %v2079, %v2106
  %v2108 = vpop.f32.mrf.mxu0
  %v2109 = vadd.f32 %v2081, %v2108
  %2110 = vmatmul.bf16.gmra.mxu0 %v1613
  %v2111 = vpop.f32.mrf.mxu0
  %v2112 = vadd.f32 %v2084, %v2111
  %v2113 = vpop.f32.mrf.mxu0
  %v2114 = vadd.f32 %v2086, %v2113
  %2115 = vmatmul.bf16.gmra.mxu0 %v1616
  %v2116 = vpop.f32.mrf.mxu0
  %v2117 = vadd.f32 %v2089, %v2116
  %v2118 = vpop.f32.mrf.mxu0
  %v2119 = vadd.f32 %v2091, %v2118
  %2120 = vmatmul.bf16.gmra.mxu0 %v1619
  %v2121 = vpop.f32.mrf.mxu0
  %v2122 = vadd.f32 %v2094, %v2121
  %v2123 = vpop.f32.mrf.mxu0
  %2124 = vdwg.mxu0
  %2125 = vmatpush.bf16.msra.mxu0 %v1488
  %2126 = vmatpush.bf16.msra.mxu0 %v1478
  %2127 = vmatpush.bf16.msra.mxu0 %v1468
  %2128 = vmatpush.bf16.msra.mxu0 %v1458
  %2129 = vmatpush.bf16.msra.mxu0 %v1448
  %2130 = vmatpush.bf16.msra.mxu0 %v1438
  %2131 = vmatpush.bf16.msra.mxu0 %v1428
  %2132 = vmatpush.bf16.msra.mxu0 %v1418
  %2133 = vmatmul.bf16.gmra.mxu0 %v1001
  %v2134 = vpop.f32.mrf.mxu0
  %v2135 = vadd.f32 0.0, %v2134
  %v2136 = vpop.f32.mrf.mxu0
  %v2137 = vadd.f32 0.0, %v2136
  %2138 = vmatmul.bf16.gmra.mxu0 %v1003
  %v2139 = vpop.f32.mrf.mxu0
  %v2140 = vadd.f32 0.0, %v2139
  %v2141 = vpop.f32.mrf.mxu0
  %v2142 = vadd.f32 0.0, %v2141
  %2143 = vmatmul.bf16.gmra.mxu0 %v1005
  %v2144 = vpop.f32.mrf.mxu0
  %v2145 = vadd.f32 0.0, %v2144
  %v2146 = vpop.f32.mrf.mxu0
  %v2147 = vadd.f32 0.0, %v2146
  %2148 = vmatmul.bf16.gmra.mxu0 %v1007
  %v2149 = vpop.f32.mrf.mxu0
  %v2150 = vadd.f32 0.0, %v2149
  %v2151 = vpop.f32.mrf.mxu0
  %2152 = vdwg.mxu0
  %2153 = vmatpush.bf16.msra.mxu0 0
  %2154 = vmatpush.bf16.msra.mxu0 0
  %2155 = vmatpush.bf16.msra.mxu0 0
  %2156 = vmatpush.bf16.msra.mxu0 0
  %2157 = vmatpush.bf16.msra.mxu0 0
  %2158 = vmatpush.bf16.msra.mxu0 0
  %2159 = vmatpush.bf16.msra.mxu0 %v1508
  %2160 = vmatpush.bf16.msra.mxu0 %v1498
  %2161 = vmatmul.bf16.gmra.mxu0 %v1610
  %v2162 = vpop.f32.mrf.mxu0
  %v2163 = vadd.f32 %v2135, %v2162
  %v2164 = vpop.f32.mrf.mxu0
  %v2165 = vadd.f32 %v2137, %v2164
  %2166 = vmatmul.bf16.gmra.mxu0 %v1613
  %v2167 = vpop.f32.mrf.mxu0
  %v2168 = vadd.f32 %v2140, %v2167
  %v2169 = vpop.f32.mrf.mxu0
  %v2170 = vadd.f32 %v2142, %v2169
  %2171 = vmatmul.bf16.gmra.mxu0 %v1616
  %v2172 = vpop.f32.mrf.mxu0
  %v2173 = vadd.f32 %v2145, %v2172
  %v2174 = vpop.f32.mrf.mxu0
  %v2175 = vadd.f32 %v2147, %v2174
  %2176 = vmatmul.bf16.gmra.mxu0 %v1619
  %v2177 = vpop.f32.mrf.mxu0
  %v2178 = vadd.f32 %v2150, %v2177
  %v2179 = vpop.f32.mrf.mxu0
  %2180 = vdwg.mxu0
  %2181 = vst [vmem:[%s4] sm:$0xff] %v1659
  %2182 = vst [vmem:[%s4 + $0x8] sm:$0xff] %v1715
  %2183 = vst [vmem:[%s4 + $0x10] sm:$0xff] %v1771
  %2184 = vst [vmem:[%s4 + $0x18] sm:$0xff] %v1827
  %2185 = vst [vmem:[%s4 + $0x20] sm:$0xff] %v1883
  %2186 = vst [vmem:[%s4 + $0x28] sm:$0xff] %v1939
  %2187 = vst [vmem:[%s4 + $0x30] sm:$0xff] %v1995
  %2188 = vst [vmem:[%s4 + $0x38] sm:$0xff] %v2051
  %2189 = vst [vmem:[%s4 + $0x40] sm:$0xff] %v2107
  %2190 = vst [vmem:[%s4 + $0x48] sm:$0xff] %v2163
  %2191 = vst [vmem:[%s4 + $0x50] sm:$0xff] %v1661
  %2192 = vst [vmem:[%s4 + $0x58] sm:$0xff] %v1717
  %2193 = vst [vmem:[%s4 + $0x60] sm:$0xff] %v1773
  %2194 = vst [vmem:[%s4 + $0x68] sm:$0xff] %v1829
  %2195 = vst [vmem:[%s4 + $0x70] sm:$0xff] %v1885
  %2196 = vst [vmem:[%s4 + $0x78] sm:$0xff] %v1941
  %2197 = vst [vmem:[%s4 + $0x80] sm:$0xff] %v1997
  %2198 = vst [vmem:[%s4 + $0x88] sm:$0xff] %v2053
  %2199 = vst [vmem:[%s4 + $0x90] sm:$0xff] %v2109
  %2200 = vst [vmem:[%s4 + $0x98] sm:$0xff] %v2165
  %2201 = vst [vmem:[%s4 + $0xa0] sm:$0xff] %v1664
  %2202 = vst [vmem:[%s4 + $0xa8] sm:$0xff] %v1720
  %2203 = vst [vmem:[%s4 + $0xb0] sm:$0xff] %v1776
  %2204 = vst [vmem:[%s4 + $0xb8] sm:$0xff] %v1832
  %2205 = vst [vmem:[%s4 + $0xc0] sm:$0xff] %v1888
  %2206 = vst [vmem:[%s4 + $0xc8] sm:$0xff] %v1944
  %2207 = vst [vmem:[%s4 + $0xd0] sm:$0xff] %v2000
  %2208 = vst [vmem:[%s4 + $0xd8] sm:$0xff] %v2056
  %2209 = vst [vmem:[%s4 + $0xe0] sm:$0xff] %v2112
  %2210 = vst [vmem:[%s4 + $0xe8] sm:$0xff] %v2168
  %2211 = vst [vmem:[%s4 + $0xf0] sm:$0xff] %v1666
  %2212 = vst [vmem:[%s4 + $0xf8] sm:$0xff] %v1722
  %2213 = vst [vmem:[%s4 + $0x100] sm:$0xff] %v1778
  %2214 = vst [vmem:[%s4 + $0x108] sm:$0xff] %v1834
  %2215 = vst [vmem:[%s4 + $0x110] sm:$0xff] %v1890
  %2216 = vst [vmem:[%s4 + $0x118] sm:$0xff] %v1946
  %2217 = vst [vmem:[%s4 + $0x120] sm:$0xff] %v2002
  %2218 = vst [vmem:[%s4 + $0x128] sm:$0xff] %v2058
  %2219 = vst [vmem:[%s4 + $0x130] sm:$0xff] %v2114
  %2220 = vst [vmem:[%s4 + $0x138] sm:$0xff] %v2170
  %2221 = vst [vmem:[%s4 + $0x140] sm:$0xff] %v1669
  %2222 = vst [vmem:[%s4 + $0x148] sm:$0xff] %v1725
  %2223 = vst [vmem:[%s4 + $0x150] sm:$0xff] %v1781
  %2224 = vst [vmem:[%s4 + $0x158] sm:$0xff] %v1837
  %2225 = vst [vmem:[%s4 + $0x160] sm:$0xff] %v1893
  %2226 = vst [vmem:[%s4 + $0x168] sm:$0xff] %v1949
  %2227 = vst [vmem:[%s4 + $0x170] sm:$0xff] %v2005
  %2228 = vst [vmem:[%s4 + $0x178] sm:$0xff] %v2061
  %2229 = vst [vmem:[%s4 + $0x180] sm:$0xff] %v2117
  %2230 = vst [vmem:[%s4 + $0x188] sm:$0xff] %v2173
  %2231 = vst [vmem:[%s4 + $0x190] sm:$0xff] %v1671
  %2232 = vst [vmem:[%s4 + $0x198] sm:$0xff] %v1727
  %2233 = vst [vmem:[%s4 + $0x1a0] sm:$0xff] %v1783
  %2234 = vst [vmem:[%s4 + $0x1a8] sm:$0xff] %v1839
  %2235 = vst [vmem:[%s4 + $0x1b0] sm:$0xff] %v1895
  %2236 = vst [vmem:[%s4 + $0x1b8] sm:$0xff] %v1951
  %2237 = vst [vmem:[%s4 + $0x1c0] sm:$0xff] %v2007
  %2238 = vst [vmem:[%s4 + $0x1c8] sm:$0xff] %v2063
  %2239 = vst [vmem:[%s4 + $0x1d0] sm:$0xff] %v2119
  %2240 = vst [vmem:[%s4 + $0x1d8] sm:$0xff] %v2175
  %2241 = vst [vmem:[%s4 + $0x1e0] sm:$0x1] %v1674
  %2242 = vst [vmem:[%s4 + $0x1e8] sm:$0x1] %v1730
  %2243 = vst [vmem:[%s4 + $0x1f0] sm:$0x1] %v1786
  %2244 = vst [vmem:[%s4 + $0x1f8] sm:$0x1] %v1842
  %2245 = vst [vmem:[%s4 + $0x200] sm:$0x1] %v1898
  %2246 = vst [vmem:[%s4 + $0x208] sm:$0x1] %v1954
  %2247 = vst [vmem:[%s4 + $0x210] sm:$0x1] %v2010
  %2248 = vst [vmem:[%s4 + $0x218] sm:$0x1] %v2066
  %2249 = vst [vmem:[%s4 + $0x220] sm:$0x1] %v2122
  %2250 = vst [vmem:[%s4 + $0x228] sm:$0x1] %v2178
  // Predicated region
  $region18: #{relu_conv_bn_conv.1} parent=0 // pred_check
    _
  $region19: #{relu_conv_bn_conv.1} parent=0 // pred_check_branch
    %2252 = sbr.rel (0) target = $region21
  $region20: #{relu_conv_bn_conv.1} parent=0 // pred_region
    _
  $region21: #{relu_conv_bn_conv.1} parent=0 // pred_fallthru
    _
  // Predicated region
  $region22: #{relu_conv_bn_conv.1} parent=0 // pred_check
    _
  $region23: #{relu_conv_bn_conv.1} parent=0 // pred_check_branch
    %2254 = sbr.rel (0) target = $region25
  $region24: #{relu_conv_bn_conv.1} parent=0 // pred_region
    _
  $region25: #{relu_conv_bn_conv.1} parent=0 // pred_fallthru
    _

</llo_original>
